<compile_context>
chip_gen: v7x
topology: tpu7x:2x2x1
jax: 0.10.0
libtpu: 0.0.40
codegen_flags: <defaults>
</compile_context>

<pallas_src>
import numpy as np
import jax
import jax.numpy as jnp
from jax import lax
from jax.experimental import pallas as pl
from jax.experimental.pallas import tpu as pltpu

_DILATIONS = (1, 1, 2, 3)      # MSFE layer1 (pad=1, d=1) + ASPP atrous rates [1, 2, 3]
_DISTINCT_DIL = (1, 2, 3)      # mask stacks are built for these
_DIL_ROW = {1: 0, 2: 1, 3: 2}


def _pad8(c):
    return ((c + 7) // 8) * 8


def _build_stack_masks(H, W, Cw, nb):
    """(3, 9*Cw, nb*H*W) f32 zero-padding masks, one stacked-tap mask per dilation."""
    HW = H * W
    idx = np.arange(HW)
    hh, ww = idx // W, idx % W
    dil_stacks = []
    for d in _DISTINCT_DIL:
        taps = []
        for kh in range(3):
            for kw in range(3):
                dh, dw = (kh - 1) * d, (kw - 1) * d
                m = ((hh + dh >= 0) & (hh + dh < H)
                     & (ww + dw >= 0) & (ww + dw < W)).astype(np.float32)
                taps.append(np.broadcast_to(m[None, :], (Cw, HW)))
        dil_stacks.append(np.concatenate(taps, axis=0))           # (9*Cw, HW)
    msk = np.stack(dil_stacks, axis=0)                            # (3, 9*Cw, HW)
    return np.ascontiguousarray(np.tile(msk, (1, 1, nb)))         # (3, 9*Cw, nb*HW)


def _make_kernel(H, W, Cw, Cout, nb, dot_dtype):
    HW = H * W
    LW = nb * HW
    f32 = jnp.float32
    pCw = _pad8(Cw)

    # 8-aligned row offsets inside the packed per-channel-vector array
    OFF_B1 = 0
    OFF_BM = pCw                 # 4 consecutive pCw slots (MSFE conv biases)
    OFF_BP = 5 * pCw
    OFF_S2 = 6 * pCw
    OFF_B2 = 7 * pCw
    OFF_B3 = 8 * pCw

    def kernel(x_ref, w1_ref, wm_ref, wse_ref, wp_ref, w3_ref, msk_ref, pk_ref,
               o_ref):
        pk = pk_ref[...]                                           # (R, 1) f32, one DMA
        b1 = pk[OFF_B1:OFF_B1 + Cw, :]
        bp = pk[OFF_BP:OFF_BP + Cw, :]
        s2 = pk[OFF_S2:OFF_S2 + Cw, :]
        b2 = pk[OFF_B2:OFF_B2 + Cw, :]
        b3 = pk[OFF_B3:OFF_B3 + Cout, :]

        # ---- conv1 (1x1) + folded bn1 + ReLU ----
        m_in = jnp.maximum(
            jnp.dot(w1_ref[...], x_ref[...].astype(dot_dtype),
                    preferred_element_type=f32) + b1, 0.0)         # (Cw, LW) f32

        # ---- dilated 3x3 conv: 9 XLU lane rotations -> register-resident
        #      (9*Cw, LW) tap stack -> one fused mask multiply -> one MXU matmul
        def conv3x3_bn_relu(inp, k, d):
            taps = []
            for kh in range(3):
                for kw in range(3):
                    off = (kh - 1) * d * W + (kw - 1) * d
                    if off == 0:
                        taps.append(inp)
                    else:
                        # result[:, j] = inp[:, (j + off) % LW]
                        taps.append(pltpu.roll(inp, (-off) % LW, 1))
            stk = jnp.concatenate(taps, axis=0)                    # (9*Cw, LW) f32
            stk = stk * msk_ref[_DIL_ROW[d]]                       # zero-pad boundaries
            bm = pk[OFF_BM + k * pCw:OFF_BM + k * pCw + Cw, :]
            y = jnp.dot(wm_ref[k], stk.astype(dot_dtype),
                        preferred_element_type=f32) + bm
            return jnp.maximum(y, 0.0)

        ys = []
        inp = m_in
        for k in range(4):
            y = conv3x3_bn_relu(inp, k, _DILATIONS[k])
            ys.append(y)
            inp = y + m_in                      # next layer input = y_k + MSFE input

        # ---- SE path: per-sample GAP (lane reduce) -> four 1x1 convs fused
        #      into one matmul -> sigmoid -> softmax over the 4 branches ----
        sms = []
        for s in range(nb):
            lo = s * HW
            gaps = [jnp.sum(ys[k][:, lo:lo + HW], axis=1, keepdims=True) * (1.0 / HW)
                    for k in range(4)]
            G = jnp.concatenate(gaps, axis=1)                      # (Cw, 4)
            P = jnp.dot(wse_ref[...], G.astype(dot_dtype),
                        preferred_element_type=f32)                # (4*Cw, 4)
            S = jnp.concatenate(
                [P[k * Cw:(k + 1) * Cw, k:k + 1] for k in range(4)], axis=1)
            e = jnp.exp(jax.nn.sigmoid(S))
            sms.append(e / jnp.sum(e, axis=1, keepdims=True))      # (Cw, 4)

        x_att = None
        for k in range(4):
            if nb == 1:
                scale = sms[0][:, k:k + 1]                         # (Cw, 1)
            else:
                scale = jnp.concatenate(
                    [jnp.broadcast_to(sms[s][:, k:k + 1], (Cw, HW))
                     for s in range(nb)], axis=1)                  # (Cw, LW)
            term = scale * ys[k]
            x_att = term if x_att is None else x_att + term

        # ---- MSFE project (1x1) + folded bn + ReLU ----
        msfe = jnp.maximum(
            jnp.dot(wp_ref[...], (x_att + m_in).astype(dot_dtype),
                    preferred_element_type=f32) + bp, 0.0)

        # ---- bn2 + ReLU ----
        out2 = jnp.maximum(msfe * s2 + b2, 0.0)

        # ---- conv3 (1x1) + folded bn3 + residual + ReLU ----
        t3 = jnp.dot(w3_ref[...], out2.astype(dot_dtype),
                     preferred_element_type=f32) + b3
        o_ref[...] = jnp.maximum(t3 + x_ref[...], 0.0).astype(o_ref.dtype)

    return kernel


def _fold_bn(gamma, beta, mean, var, eps=1e-5):
    scale = gamma / jnp.sqrt(var + eps)
    return scale, beta - mean * scale


def bottleneck_pallas(x, params, *, dot_dtype=jnp.bfloat16):
    """Bottleneck forward (stride=1, downsample=None), NCHW in/out."""
    N, Cin, H, W = x.shape
    HW = H * W
    Cw = params['w1'].shape[0]
    Cout = params['w3'].shape[0]
    assert Cin == Cout, "residual add needs inplanes == planes*expansion (downsample=None)"
    assert HW % 128 == 0, "lane-dense layout requires H*W to be a multiple of 128"

    # samples folded into the lane axis per grid step: largest divisor of N that
    # still leaves >= 2 grid steps (v7x has 2 TensorCores).
    nb = 1
    if N >= 2:
        for cand in range(N // 2, 0, -1):
            if N % cand == 0:
                nb = cand
                break
    G = N // nb
    LW = nb * HW

    # ---- fold eval-mode BatchNorm into conv weights + per-channel biases ----
    s1, b1v = _fold_bn(*params['bn1'])
    w1f = (params['w1'] * s1[:, None]).astype(dot_dtype)

    gm, gb, gmu, gvar = params['bnm']
    wmf, bmv = [], []
    for k in range(4):
        s, b = _fold_bn(gm[k], gb[k], gmu[k], gvar[k])
        wk = params['wm'][k] * s[:, None, None, None]               # (Cw, Cw, 3, 3)
        # stacked-tap columns ordered (kh, kw)-major, ci-minor — matches kernel stack
        wmf.append(jnp.transpose(wk, (0, 2, 3, 1)).reshape(Cw, 9 * Cw))
        bmv.append(b)
    wmf = jnp.stack(wmf, axis=0).astype(dot_dtype)                  # (4, Cw, 9*Cw)

    wse = params['wse'].reshape(4 * Cw, Cw).astype(dot_dtype)       # [SE1;SE2;SE3;SE4]

    sp, bpv = _fold_bn(*params['bnp'])
    wpf = (params['wp'] * sp[:, None]).astype(dot_dtype)

    s2, b2v = _fold_bn(*params['bn2'])
    s3, b3v = _fold_bn(*params['bn3'])
    w3f = (params['w3'] * s3[:, None]).astype(dot_dtype)

    # ---- pack all tiny per-channel vectors into one (R, 1) array (one DMA) ----
    pCw, pCo = _pad8(Cw), _pad8(Cout)
    R = 8 * pCw + pCo
    pk = jnp.zeros((R,), jnp.float32)
    pk = pk.at[0:Cw].set(b1v)
    for k in range(4):
        pk = pk.at[pCw * (1 + k):pCw * (1 + k) + Cw].set(bmv[k])
    pk = pk.at[5 * pCw:5 * pCw + Cw].set(bpv)
    pk = pk.at[6 * pCw:6 * pCw + Cw].set(s2)
    pk = pk.at[7 * pCw:7 * pCw + Cw].set(b2v)
    pk = pk.at[8 * pCw:8 * pCw + Cout].set(b3v)
    pk = pk[:, None]                                                # (R, 1)

    masks = jnp.asarray(_build_stack_masks(H, W, Cw, nb))           # (3, 9*Cw, LW) f32

    # batch folded into the lane axis: (Cin, N*HW), lane-dense
    xt = jnp.transpose(x.reshape(N, Cin, HW), (1, 0, 2)).reshape(Cin, N * HW)

    kernel = _make_kernel(H, W, Cw, Cout, nb, dot_dtype)
    out = pl.pallas_call(
        kernel,
        out_shape=jax.ShapeDtypeStruct((Cout, N * HW), x.dtype),
        grid=(G,),
        in_specs=[
            pl.BlockSpec((Cin, LW), lambda g: (0, g)),              # x slab
            pl.BlockSpec((Cw, Cin), lambda g: (0, 0)),              # conv1 (bn1-folded)
            pl.BlockSpec((4, Cw, 9 * Cw), lambda g: (0, 0, 0)),     # MSFE 3x3 weights
            pl.BlockSpec((4 * Cw, Cw), lambda g: (0, 0)),           # SE weights (stacked)
            pl.BlockSpec((Cw, Cw), lambda g: (0, 0)),               # project weight
            pl.BlockSpec((Cout, Cw), lambda g: (0, 0)),             # conv3 (bn3-folded)
            pl.BlockSpec((3, 9 * Cw, LW), lambda g: (0, 0, 0)),     # boundary masks
            pl.BlockSpec((R, 1), lambda g: (0, 0)),                 # packed biases/scales
        ],
        out_specs=pl.BlockSpec((Cout, LW), lambda g: (0, g)),
        compiler_params=pltpu.CompilerParams(
            dimension_semantics=("parallel",)),
    )(xt, w1f, wmf, wse, wpf, w3f, masks, pk)
    return out.reshape(Cout, N, HW).transpose(1, 0, 2).reshape(N, Cout, H, W)


def bottleneck_reference(x, params):
    """Pure-JAX mirror of the PyTorch Bottleneck (eval-mode BatchNorm)."""
    eps = 1e-5
    relu = jax.nn.relu

    def bn(v, p):
        g, b, m, var = p
        return ((v - m[None, :, None, None])
                / jnp.sqrt(var[None, :, None, None] + eps)
                * g[None, :, None, None] + b[None, :, None, None])

    def c1x1(v, w):
        return jnp.einsum('oi,nihw->nohw', w, v, precision=lax.Precision.HIGHEST)

    def c3x3(v, w, d):
        return lax.conv_general_dilated(
            v, w, window_strides=(1, 1), padding=((d, d), (d, d)),
            rhs_dilation=(d, d), dimension_numbers=('NCHW', 'OIHW', 'NCHW'),
            precision=lax.Precision.HIGHEST)

    identity = x
    m_in = relu(bn(c1x1(x, params['w1']), params['bn1']))

    gm, gb, gmu, gvar = params['bnm']
    ys, inp = [], m_in
    for k in range(4):
        y = relu(bn(c3x3(inp, params['wm'][k], _DILATIONS[k]),
                    (gm[k], gb[k], gmu[k], gvar[k])))
        ys.append(y)
        inp = y + m_in

    gaps = [jnp.mean(y, axis=(2, 3)) for y in ys]                   # (N, Cw)
    se = [jnp.einsum('oi,ni->no', params['wse'][k], gaps[k],
                     precision=lax.Precision.HIGHEST) for k in range(4)]
    wgt = jax.nn.softmax(jax.nn.sigmoid(jnp.stack(se, axis=2)), axis=2)  # (N, Cw, 4)
    x_att = sum(wgt[:, :, k][:, :, None, None] * ys[k] for k in range(4))
    msfe = relu(bn(c1x1(x_att + m_in, params['wp']), params['bnp']))

    out = relu(bn(msfe, params['bn2']))
    out = bn(c1x1(out, params['w3']), params['bn3'])
    return relu(out + identity)


if __name__ == "__main__":
    # Bottleneck(inplanes=16, planes=4): width = 4, output channels = 16 == inplanes
    N, H, W = 2, 16, 16
    inplanes, planes = 16, 4
    Cw = planes                      # base_width=64, groups=1 -> width == planes
    Cout = planes * 4                # expansion = 4

    key = jax.random.PRNGKey(0)
    keys = iter(jax.random.split(key, 32))

    def nrm(shape, scale):
        return jax.random.normal(next(keys), shape, jnp.float32) * scale

    def bn_par(shape):
        return (1.0 + nrm(shape, 0.2),                       # gamma
                nrm(shape, 0.1),                             # beta
                nrm(shape, 0.2),                             # running mean
                jax.random.uniform(next(keys), shape, jnp.float32, 0.5, 1.5))  # running var

    x = jax.random.normal(next(keys), (N, inplanes, H, W), jnp.float32)
    params = {
        'w1': nrm((Cw, inplanes), 0.3),
        'bn1': bn_par((Cw,)),
        'wm': nrm((4, Cw, Cw, 3, 3), 0.25),
        'bnm': bn_par((4, Cw)),
        'wse': nrm((4, Cw, Cw), 0.3),
        'wp': nrm((Cw, Cw), 0.3),
        'bnp': bn_par((Cw,)),
        'bn2': bn_par((Cw,)),
        'w3': nrm((Cout, Cw), 0.3),
        'bn3': bn_par((Cout,)),
    }

    ref = np.asarray(bottleneck_reference(x, params))

    # (1) semantic check with f32 MXU operands (tight tolerance, same code path)
    out_f32 = jax.block_until_ready(bottleneck_pallas(x, params, dot_dtype=jnp.float32))
    np.testing.assert_allclose(np.asarray(out_f32), ref, rtol=2e-2, atol=2e-2)

    # (2) default fast path: bf16 MXU operands (f32 accumulation).  bf16 operand
    # rounding produces errors proportional to the activation range, so the
    # sanity check is scaled to the output magnitude.
    out = jax.block_until_ready(bottleneck_pallas(x, params))
    out_np = np.asarray(out)
    scale = float(np.abs(ref).max()) + 1e-6
    max_err = float(np.abs(out_np - ref).max())
    assert max_err <= 0.1 * scale, f"bf16 path error too large: {max_err} vs range {scale}"

    print("KERNEL_OK")
</pallas_src>

<mosaic_0001>
module attributes {stable_mosaic.version = 11 : i64} {
  func.func @kernel(%arg0: i32, %arg1: memref<16x256xf32, #tpu.memory_space<vmem>>, %arg2: memref<4x16xf32, #tpu.memory_space<vmem>>, %arg3: memref<4x4x36xf32, #tpu.memory_space<vmem>>, %arg4: memref<16x4xf32, #tpu.memory_space<vmem>>, %arg5: memref<4x4xf32, #tpu.memory_space<vmem>>, %arg6: memref<16x4xf32, #tpu.memory_space<vmem>>, %arg7: memref<3x36x256xf32, #tpu.memory_space<vmem>>, %arg8: memref<80x1xf32, #tpu.memory_space<vmem>>, %arg9: memref<16x256xf32, #tpu.memory_space<vmem>>) attributes {dimension_semantics = [#tpu.dimension_semantics<parallel>], iteration_bounds = array<i64: 2>, scalar_prefetch = 0 : i64, scratch_operands = 0 : i64, tpu.core_type = #tpu.core_type<tc>, window_params = [{transform_indices = @transform_0, window_bounds = array<i64: 16, 256>}, {pipeline_mode = #tpu.pipeline_mode<synchronous>, transform_indices = @transform_1, window_bounds = array<i64: 4, 16>}, {pipeline_mode = #tpu.pipeline_mode<synchronous>, transform_indices = @transform_2, window_bounds = array<i64: 4, 4, 36>}, {pipeline_mode = #tpu.pipeline_mode<synchronous>, transform_indices = @transform_3, window_bounds = array<i64: 16, 4>}, {pipeline_mode = #tpu.pipeline_mode<synchronous>, transform_indices = @transform_4, window_bounds = array<i64: 4, 4>}, {pipeline_mode = #tpu.pipeline_mode<synchronous>, transform_indices = @transform_5, window_bounds = array<i64: 16, 4>}, {pipeline_mode = #tpu.pipeline_mode<synchronous>, transform_indices = @transform_6, window_bounds = array<i64: 3, 36, 256>}, {pipeline_mode = #tpu.pipeline_mode<synchronous>, transform_indices = @transform_7, window_bounds = array<i64: 80, 1>}, {transform_indices = @transform_8, window_bounds = array<i64: 16, 256>}]} {
    %c0 = arith.constant 0 : index
    %c0_0 = arith.constant 0 : index
    %0 = vector.load %arg8[%c0, %c0_0] : memref<80x1xf32, #tpu.memory_space<vmem>>, vector<80x1xf32>
    %1 = vector.extract_strided_slice %0 {offsets = [0, 0], sizes = [4, 1], strides = [1, 1]} : vector<80x1xf32> to vector<4x1xf32>
    %2 = vector.extract_strided_slice %0 {offsets = [40, 0], sizes = [4, 1], strides = [1, 1]} : vector<80x1xf32> to vector<4x1xf32>
    %3 = vector.extract_strided_slice %0 {offsets = [48, 0], sizes = [4, 1], strides = [1, 1]} : vector<80x1xf32> to vector<4x1xf32>
    %4 = vector.extract_strided_slice %0 {offsets = [56, 0], sizes = [4, 1], strides = [1, 1]} : vector<80x1xf32> to vector<4x1xf32>
    %5 = vector.extract_strided_slice %0 {offsets = [64, 0], sizes = [16, 1], strides = [1, 1]} : vector<80x1xf32> to vector<16x1xf32>
    %c0_1 = arith.constant 0 : index
    %c0_2 = arith.constant 0 : index
    %6 = vector.load %arg2[%c0_1, %c0_2] : memref<4x16xf32, #tpu.memory_space<vmem>>, vector<4x16xf32>
    %c0_3 = arith.constant 0 : index
    %c0_4 = arith.constant 0 : index
    %7 = vector.load %arg1[%c0_3, %c0_4] : memref<16x256xf32, #tpu.memory_space<vmem>>, vector<16x256xf32>
    %cst = arith.constant dense<0.000000e+00> : vector<4x256xf32>
    %8 = tpu.matmul %6, %7, %cst {dimension_numbers = #tpu.dot_dimension_numbers<[1], [0], [0], [1], [0, 0, 1, 1], [], []>} : vector<4x16xf32>, vector<16x256xf32>, vector<4x256xf32> -> vector<4x256xf32>
    %9 = vector.broadcast %1 : vector<4x1xf32> to vector<4x256xf32>
    %10 = arith.addf %8, %9 : vector<4x256xf32>
    %cst_5 = arith.constant 0.000000e+00 : f32
    %11 = vector.broadcast %cst_5 : f32 to vector<4x256xf32>
    %12 = arith.maximumf %10, %11 : vector<4x256xf32>
    %c17_i32 = arith.constant 17 : i32
    %13 = tpu.dynamic_rotate %12 by %c17_i32 dim 1 : vector<4x256xf32>, i32 -> vector<4x256xf32>
    %c16_i32 = arith.constant 16 : i32
    %14 = tpu.dynamic_rotate %12 by %c16_i32 dim 1 : vector<4x256xf32>, i32 -> vector<4x256xf32>
    %c15_i32 = arith.constant 15 : i32
    %15 = tpu.dynamic_rotate %12 by %c15_i32 dim 1 : vector<4x256xf32>, i32 -> vector<4x256xf32>
    %c1_i32 = arith.constant 1 : i32
    %16 = tpu.dynamic_rotate %12 by %c1_i32 dim 1 : vector<4x256xf32>, i32 -> vector<4x256xf32>
    %c255_i32 = arith.constant 255 : i32
    %17 = tpu.dynamic_rotate %12 by %c255_i32 dim 1 : vector<4x256xf32>, i32 -> vector<4x256xf32>
    %c241_i32 = arith.constant 241 : i32
    %18 = tpu.dynamic_rotate %12 by %c241_i32 dim 1 : vector<4x256xf32>, i32 -> vector<4x256xf32>
    %c240_i32 = arith.constant 240 : i32
    %19 = tpu.dynamic_rotate %12 by %c240_i32 dim 1 : vector<4x256xf32>, i32 -> vector<4x256xf32>
    %c239_i32 = arith.constant 239 : i32
    %20 = tpu.dynamic_rotate %12 by %c239_i32 dim 1 : vector<4x256xf32>, i32 -> vector<4x256xf32>
    %21 = tpu.concatenate %13, %14, %15, %16, %12, %17, %18, %19, %20 in 0 : vector<4x256xf32>, vector<4x256xf32>, vector<4x256xf32>, vector<4x256xf32>, vector<4x256xf32>, vector<4x256xf32>, vector<4x256xf32>, vector<4x256xf32>, vector<4x256xf32> -> vector<36x256xf32>
    %c0_6 = arith.constant 0 : index
    %c0_7 = arith.constant 0 : index
    %c0_8 = arith.constant 0 : index
    %22 = vector.load %arg7[%c0_6, %c0_7, %c0_8] : memref<3x36x256xf32, #tpu.memory_space<vmem>>, vector<1x36x256xf32>
    %23 = vector.shape_cast %22 : vector<1x36x256xf32> to vector<36x256xf32>
    %24 = arith.mulf %21, %23 : vector<36x256xf32>
    %25 = vector.extract_strided_slice %0 {offsets = [8, 0], sizes = [4, 1], strides = [1, 1]} : vector<80x1xf32> to vector<4x1xf32>
    %c0_9 = arith.constant 0 : index
    %c0_10 = arith.constant 0 : index
    %c0_11 = arith.constant 0 : index
    %26 = vector.load %arg3[%c0_9, %c0_10, %c0_11] : memref<4x4x36xf32, #tpu.memory_space<vmem>>, vector<1x4x36xf32>
    %27 = vector.shape_cast %26 : vector<1x4x36xf32> to vector<4x36xf32>
    %cst_12 = arith.constant dense<0.000000e+00> : vector<4x256xf32>
    %28 = tpu.matmul %27, %24, %cst_12 {dimension_numbers = #tpu.dot_dimension_numbers<[1], [0], [0], [1], [0, 0, 1, 1], [], []>} : vector<4x36xf32>, vector<36x256xf32>, vector<4x256xf32> -> vector<4x256xf32>
    %29 = vector.broadcast %25 : vector<4x1xf32> to vector<4x256xf32>
    %30 = arith.addf %28, %29 : vector<4x256xf32>
    %cst_13 = arith.constant 0.000000e+00 : f32
    %31 = vector.broadcast %cst_13 : f32 to vector<4x256xf32>
    %32 = arith.maximumf %30, %31 : vector<4x256xf32>
    %33 = arith.addf %32, %12 : vector<4x256xf32>
    %c17_i32_14 = arith.constant 17 : i32
    %34 = tpu.dynamic_rotate %33 by %c17_i32_14 dim 1 : vector<4x256xf32>, i32 -> vector<4x256xf32>
    %c16_i32_15 = arith.constant 16 : i32
    %35 = tpu.dynamic_rotate %33 by %c16_i32_15 dim 1 : vector<4x256xf32>, i32 -> vector<4x256xf32>
    %c15_i32_16 = arith.constant 15 : i32
    %36 = tpu.dynamic_rotate %33 by %c15_i32_16 dim 1 : vector<4x256xf32>, i32 -> vector<4x256xf32>
    %c1_i32_17 = arith.constant 1 : i32
    %37 = tpu.dynamic_rotate %33 by %c1_i32_17 dim 1 : vector<4x256xf32>, i32 -> vector<4x256xf32>
    %c255_i32_18 = arith.constant 255 : i32
    %38 = tpu.dynamic_rotate %33 by %c255_i32_18 dim 1 : vector<4x256xf32>, i32 -> vector<4x256xf32>
    %c241_i32_19 = arith.constant 241 : i32
    %39 = tpu.dynamic_rotate %33 by %c241_i32_19 dim 1 : vector<4x256xf32>, i32 -> vector<4x256xf32>
    %c240_i32_20 = arith.constant 240 : i32
    %40 = tpu.dynamic_rotate %33 by %c240_i32_20 dim 1 : vector<4x256xf32>, i32 -> vector<4x256xf32>
    %c239_i32_21 = arith.constant 239 : i32
    %41 = tpu.dynamic_rotate %33 by %c239_i32_21 dim 1 : vector<4x256xf32>, i32 -> vector<4x256xf32>
    %42 = tpu.concatenate %34, %35, %36, %37, %33, %38, %39, %40, %41 in 0 : vector<4x256xf32>, vector<4x256xf32>, vector<4x256xf32>, vector<4x256xf32>, vector<4x256xf32>, vector<4x256xf32>, vector<4x256xf32>, vector<4x256xf32>, vector<4x256xf32> -> vector<36x256xf32>
    %c0_22 = arith.constant 0 : index
    %c0_23 = arith.constant 0 : index
    %c0_24 = arith.constant 0 : index
    %43 = vector.load %arg7[%c0_22, %c0_23, %c0_24] : memref<3x36x256xf32, #tpu.memory_space<vmem>>, vector<1x36x256xf32>
    %44 = vector.shape_cast %43 : vector<1x36x256xf32> to vector<36x256xf32>
    %45 = arith.mulf %42, %44 : vector<36x256xf32>
    %46 = vector.extract_strided_slice %0 {offsets = [16, 0], sizes = [4, 1], strides = [1, 1]} : vector<80x1xf32> to vector<4x1xf32>
    %c1 = arith.constant 1 : index
    %c0_25 = arith.constant 0 : index
    %c0_26 = arith.constant 0 : index
    %47 = vector.load %arg3[%c1, %c0_25, %c0_26] : memref<4x4x36xf32, #tpu.memory_space<vmem>>, vector<1x4x36xf32>
    %48 = vector.shape_cast %47 : vector<1x4x36xf32> to vector<4x36xf32>
    %cst_27 = arith.constant dense<0.000000e+00> : vector<4x256xf32>
    %49 = tpu.matmul %48, %45, %cst_27 {dimension_numbers = #tpu.dot_dimension_numbers<[1], [0], [0], [1], [0, 0, 1, 1], [], []>} : vector<4x36xf32>, vector<36x256xf32>, vector<4x256xf32> -> vector<4x256xf32>
    %50 = vector.broadcast %46 : vector<4x1xf32> to vector<4x256xf32>
    %51 = arith.addf %49, %50 : vector<4x256xf32>
    %cst_28 = arith.constant 0.000000e+00 : f32
    %52 = vector.broadcast %cst_28 : f32 to vector<4x256xf32>
    %53 = arith.maximumf %51, %52 : vector<4x256xf32>
    %54 = arith.addf %53, %12 : vector<4x256xf32>
    %c34_i32 = arith.constant 34 : i32
    %55 = tpu.dynamic_rotate %54 by %c34_i32 dim 1 : vector<4x256xf32>, i32 -> vector<4x256xf32>
    %c32_i32 = arith.constant 32 : i32
    %56 = tpu.dynamic_rotate %54 by %c32_i32 dim 1 : vector<4x256xf32>, i32 -> vector<4x256xf32>
    %c30_i32 = arith.constant 30 : i32
    %57 = tpu.dynamic_rotate %54 by %c30_i32 dim 1 : vector<4x256xf32>, i32 -> vector<4x256xf32>
    %c2_i32 = arith.constant 2 : i32
    %58 = tpu.dynamic_rotate %54 by %c2_i32 dim 1 : vector<4x256xf32>, i32 -> vector<4x256xf32>
    %c254_i32 = arith.constant 254 : i32
    %59 = tpu.dynamic_rotate %54 by %c254_i32 dim 1 : vector<4x256xf32>, i32 -> vector<4x256xf32>
    %c226_i32 = arith.constant 226 : i32
    %60 = tpu.dynamic_rotate %54 by %c226_i32 dim 1 : vector<4x256xf32>, i32 -> vector<4x256xf32>
    %c224_i32 = arith.constant 224 : i32
    %61 = tpu.dynamic_rotate %54 by %c224_i32 dim 1 : vector<4x256xf32>, i32 -> vector<4x256xf32>
    %c222_i32 = arith.constant 222 : i32
    %62 = tpu.dynamic_rotate %54 by %c222_i32 dim 1 : vector<4x256xf32>, i32 -> vector<4x256xf32>
    %63 = tpu.concatenate %55, %56, %57, %58, %54, %59, %60, %61, %62 in 0 : vector<4x256xf32>, vector<4x256xf32>, vector<4x256xf32>, vector<4x256xf32>, vector<4x256xf32>, vector<4x256xf32>, vector<4x256xf32>, vector<4x256xf32>, vector<4x256xf32> -> vector<36x256xf32>
    %c1_29 = arith.constant 1 : index
    %c0_30 = arith.constant 0 : index
    %c0_31 = arith.constant 0 : index
    %64 = vector.load %arg7[%c1_29, %c0_30, %c0_31] : memref<3x36x256xf32, #tpu.memory_space<vmem>>, vector<1x36x256xf32>
    %65 = vector.shape_cast %64 : vector<1x36x256xf32> to vector<36x256xf32>
    %66 = arith.mulf %63, %65 : vector<36x256xf32>
    %67 = vector.extract_strided_slice %0 {offsets = [24, 0], sizes = [4, 1], strides = [1, 1]} : vector<80x1xf32> to vector<4x1xf32>
    %c2 = arith.constant 2 : index
    %c0_32 = arith.constant 0 : index
    %c0_33 = arith.constant 0 : index
    %68 = vector.load %arg3[%c2, %c0_32, %c0_33] : memref<4x4x36xf32, #tpu.memory_space<vmem>>, vector<1x4x36xf32>
    %69 = vector.shape_cast %68 : vector<1x4x36xf32> to vector<4x36xf32>
    %cst_34 = arith.constant dense<0.000000e+00> : vector<4x256xf32>
    %70 = tpu.matmul %69, %66, %cst_34 {dimension_numbers = #tpu.dot_dimension_numbers<[1], [0], [0], [1], [0, 0, 1, 1], [], []>} : vector<4x36xf32>, vector<36x256xf32>, vector<4x256xf32> -> vector<4x256xf32>
    %71 = vector.broadcast %67 : vector<4x1xf32> to vector<4x256xf32>
    %72 = arith.addf %70, %71 : vector<4x256xf32>
    %cst_35 = arith.constant 0.000000e+00 : f32
    %73 = vector.broadcast %cst_35 : f32 to vector<4x256xf32>
    %74 = arith.maximumf %72, %73 : vector<4x256xf32>
    %75 = arith.addf %74, %12 : vector<4x256xf32>
    %c51_i32 = arith.constant 51 : i32
    %76 = tpu.dynamic_rotate %75 by %c51_i32 dim 1 : vector<4x256xf32>, i32 -> vector<4x256xf32>
    %c48_i32 = arith.constant 48 : i32
    %77 = tpu.dynamic_rotate %75 by %c48_i32 dim 1 : vector<4x256xf32>, i32 -> vector<4x256xf32>
    %c45_i32 = arith.constant 45 : i32
    %78 = tpu.dynamic_rotate %75 by %c45_i32 dim 1 : vector<4x256xf32>, i32 -> vector<4x256xf32>
    %c3_i32 = arith.constant 3 : i32
    %79 = tpu.dynamic_rotate %75 by %c3_i32 dim 1 : vector<4x256xf32>, i32 -> vector<4x256xf32>
    %c253_i32 = arith.constant 253 : i32
    %80 = tpu.dynamic_rotate %75 by %c253_i32 dim 1 : vector<4x256xf32>, i32 -> vector<4x256xf32>
    %c211_i32 = arith.constant 211 : i32
    %81 = tpu.dynamic_rotate %75 by %c211_i32 dim 1 : vector<4x256xf32>, i32 -> vector<4x256xf32>
    %c208_i32 = arith.constant 208 : i32
    %82 = tpu.dynamic_rotate %75 by %c208_i32 dim 1 : vector<4x256xf32>, i32 -> vector<4x256xf32>
    %c205_i32 = arith.constant 205 : i32
    %83 = tpu.dynamic_rotate %75 by %c205_i32 dim 1 : vector<4x256xf32>, i32 -> vector<4x256xf32>
    %84 = tpu.concatenate %76, %77, %78, %79, %75, %80, %81, %82, %83 in 0 : vector<4x256xf32>, vector<4x256xf32>, vector<4x256xf32>, vector<4x256xf32>, vector<4x256xf32>, vector<4x256xf32>, vector<4x256xf32>, vector<4x256xf32>, vector<4x256xf32> -> vector<36x256xf32>
    %c2_36 = arith.constant 2 : index
    %c0_37 = arith.constant 0 : index
    %c0_38 = arith.constant 0 : index
    %85 = vector.load %arg7[%c2_36, %c0_37, %c0_38] : memref<3x36x256xf32, #tpu.memory_space<vmem>>, vector<1x36x256xf32>
    %86 = vector.shape_cast %85 : vector<1x36x256xf32> to vector<36x256xf32>
    %87 = arith.mulf %84, %86 : vector<36x256xf32>
    %88 = vector.extract_strided_slice %0 {offsets = [32, 0], sizes = [4, 1], strides = [1, 1]} : vector<80x1xf32> to vector<4x1xf32>
    %c3 = arith.constant 3 : index
    %c0_39 = arith.constant 0 : index
    %c0_40 = arith.constant 0 : index
    %89 = vector.load %arg3[%c3, %c0_39, %c0_40] : memref<4x4x36xf32, #tpu.memory_space<vmem>>, vector<1x4x36xf32>
    %90 = vector.shape_cast %89 : vector<1x4x36xf32> to vector<4x36xf32>
    %cst_41 = arith.constant dense<0.000000e+00> : vector<4x256xf32>
    %91 = tpu.matmul %90, %87, %cst_41 {dimension_numbers = #tpu.dot_dimension_numbers<[1], [0], [0], [1], [0, 0, 1, 1], [], []>} : vector<4x36xf32>, vector<36x256xf32>, vector<4x256xf32> -> vector<4x256xf32>
    %92 = vector.broadcast %88 : vector<4x1xf32> to vector<4x256xf32>
    %93 = arith.addf %91, %92 : vector<4x256xf32>
    %cst_42 = arith.constant 0.000000e+00 : f32
    %94 = vector.broadcast %cst_42 : f32 to vector<4x256xf32>
    %95 = arith.maximumf %93, %94 : vector<4x256xf32>
    %cst_43 = arith.constant dense<0.000000e+00> : vector<4xf32>
    %96 = vector.multi_reduction <add>, %32, %cst_43 [1] : vector<4x256xf32> to vector<4xf32>
    %97 = vector.shape_cast %96 : vector<4xf32> to vector<4x1xf32>
    %cst_44 = arith.constant 3.906250e-03 : f32
    %98 = vector.broadcast %cst_44 : f32 to vector<4x1xf32>
    %99 = arith.mulf %97, %98 : vector<4x1xf32>
    %cst_45 = arith.constant dense<0.000000e+00> : vector<4xf32>
    %100 = vector.multi_reduction <add>, %53, %cst_45 [1] : vector<4x256xf32> to vector<4xf32>
    %101 = vector.shape_cast %100 : vector<4xf32> to vector<4x1xf32>
    %cst_46 = arith.constant 3.906250e-03 : f32
    %102 = vector.broadcast %cst_46 : f32 to vector<4x1xf32>
    %103 = arith.mulf %101, %102 : vector<4x1xf32>
    %cst_47 = arith.constant dense<0.000000e+00> : vector<4xf32>
    %104 = vector.multi_reduction <add>, %74, %cst_47 [1] : vector<4x256xf32> to vector<4xf32>
    %105 = vector.shape_cast %104 : vector<4xf32> to vector<4x1xf32>
    %cst_48 = arith.constant 3.906250e-03 : f32
    %106 = vector.broadcast %cst_48 : f32 to vector<4x1xf32>
    %107 = arith.mulf %105, %106 : vector<4x1xf32>
    %cst_49 = arith.constant dense<0.000000e+00> : vector<4xf32>
    %108 = vector.multi_reduction <add>, %95, %cst_49 [1] : vector<4x256xf32> to vector<4xf32>
    %109 = vector.shape_cast %108 : vector<4xf32> to vector<4x1xf32>
    %cst_50 = arith.constant 3.906250e-03 : f32
    %110 = vector.broadcast %cst_50 : f32 to vector<4x1xf32>
    %111 = arith.mulf %109, %110 : vector<4x1xf32>
    %112 = tpu.concatenate %99, %103, %107, %111 in 1 : vector<4x1xf32>, vector<4x1xf32>, vector<4x1xf32>, vector<4x1xf32> -> vector<4x4xf32>
    %c0_51 = arith.constant 0 : index
    %c0_52 = arith.constant 0 : index
    %113 = vector.load %arg4[%c0_51, %c0_52] : memref<16x4xf32, #tpu.memory_space<vmem>>, vector<16x4xf32>
    %cst_53 = arith.constant dense<0.000000e+00> : vector<16x4xf32>
    %114 = tpu.matmul %113, %112, %cst_53 {dimension_numbers = #tpu.dot_dimension_numbers<[1], [0], [0], [1], [0, 0, 1, 1], [], []>} : vector<16x4xf32>, vector<4x4xf32>, vector<16x4xf32> -> vector<16x4xf32>
    %115 = vector.extract_strided_slice %114 {offsets = [0, 0], sizes = [4, 1], strides = [1, 1]} : vector<16x4xf32> to vector<4x1xf32>
    %116 = vector.extract_strided_slice %114 {offsets = [4, 1], sizes = [4, 1], strides = [1, 1]} : vector<16x4xf32> to vector<4x1xf32>
    %117 = vector.extract_strided_slice %114 {offsets = [8, 2], sizes = [4, 1], strides = [1, 1]} : vector<16x4xf32> to vector<4x1xf32>
    %118 = vector.extract_strided_slice %114 {offsets = [12, 3], sizes = [4, 1], strides = [1, 1]} : vector<16x4xf32> to vector<4x1xf32>
    %119 = tpu.concatenate %115, %116, %117, %118 in 1 : vector<4x1xf32>, vector<4x1xf32>, vector<4x1xf32>, vector<4x1xf32> -> vector<4x4xf32>
    %120 = arith.negf %119 : vector<4x4xf32>
    %121 = math.exp %120 : vector<4x4xf32>
    %cst_54 = arith.constant 1.000000e+00 : f32
    %122 = vector.broadcast %cst_54 : f32 to vector<4x4xf32>
    %123 = arith.addf %122, %121 : vector<4x4xf32>
    %124 = arith.divf %122, %123 : vector<4x4xf32>
    %125 = math.exp %124 : vector<4x4xf32>
    %cst_55 = arith.constant dense<0.000000e+00> : vector<4xf32>
    %126 = vector.multi_reduction <add>, %125, %cst_55 [1] : vector<4x4xf32> to vector<4xf32>
    %127 = vector.shape_cast %126 : vector<4xf32> to vector<4x1xf32>
    %128 = vector.broadcast %127 : vector<4x1xf32> to vector<4x4xf32>
    %129 = arith.divf %125, %128 : vector<4x4xf32>
    %130 = vector.extract_strided_slice %129 {offsets = [0, 0], sizes = [4, 1], strides = [1, 1]} : vector<4x4xf32> to vector<4x1xf32>
    %131 = vector.broadcast %130 : vector<4x1xf32> to vector<4x256xf32>
    %132 = arith.mulf %131, %32 : vector<4x256xf32>
    %133 = vector.extract_strided_slice %129 {offsets = [0, 1], sizes = [4, 1], strides = [1, 1]} : vector<4x4xf32> to vector<4x1xf32>
    %134 = vector.broadcast %133 : vector<4x1xf32> to vector<4x256xf32>
    %135 = arith.mulf %134, %53 : vector<4x256xf32>
    %136 = arith.addf %132, %135 : vector<4x256xf32>
    %137 = vector.extract_strided_slice %129 {offsets = [0, 2], sizes = [4, 1], strides = [1, 1]} : vector<4x4xf32> to vector<4x1xf32>
    %138 = vector.broadcast %137 : vector<4x1xf32> to vector<4x256xf32>
    %139 = arith.mulf %138, %74 : vector<4x256xf32>
    %140 = arith.addf %136, %139 : vector<4x256xf32>
    %141 = vector.extract_strided_slice %129 {offsets = [0, 3], sizes = [4, 1], strides = [1, 1]} : vector<4x4xf32> to vector<4x1xf32>
    %142 = vector.broadcast %141 : vector<4x1xf32> to vector<4x256xf32>
    %143 = arith.mulf %142, %95 : vector<4x256xf32>
    %144 = arith.addf %140, %143 : vector<4x256xf32>
    %c0_56 = arith.constant 0 : index
    %c0_57 = arith.constant 0 : index
    %145 = vector.load %arg5[%c0_56, %c0_57] : memref<4x4xf32, #tpu.memory_space<vmem>>, vector<4x4xf32>
    %146 = arith.addf %144, %12 : vector<4x256xf32>
    %cst_58 = arith.constant dense<0.000000e+00> : vector<4x256xf32>
    %147 = tpu.matmul %145, %146, %cst_58 {dimension_numbers = #tpu.dot_dimension_numbers<[1], [0], [0], [1], [0, 0, 1, 1], [], []>} : vector<4x4xf32>, vector<4x256xf32>, vector<4x256xf32> -> vector<4x256xf32>
    %148 = vector.broadcast %2 : vector<4x1xf32> to vector<4x256xf32>
    %149 = arith.addf %147, %148 : vector<4x256xf32>
    %cst_59 = arith.constant 0.000000e+00 : f32
    %150 = vector.broadcast %cst_59 : f32 to vector<4x256xf32>
    %151 = arith.maximumf %149, %150 : vector<4x256xf32>
    %152 = vector.broadcast %3 : vector<4x1xf32> to vector<4x256xf32>
    %153 = arith.mulf %151, %152 : vector<4x256xf32>
    %154 = vector.broadcast %4 : vector<4x1xf32> to vector<4x256xf32>
    %155 = arith.addf %153, %154 : vector<4x256xf32>
    %cst_60 = arith.constant 0.000000e+00 : f32
    %156 = vector.broadcast %cst_60 : f32 to vector<4x256xf32>
    %157 = arith.maximumf %155, %156 : vector<4x256xf32>
    %c0_61 = arith.constant 0 : index
    %c0_62 = arith.constant 0 : index
    %158 = vector.load %arg6[%c0_61, %c0_62] : memref<16x4xf32, #tpu.memory_space<vmem>>, vector<16x4xf32>
    %cst_63 = arith.constant dense<0.000000e+00> : vector<16x256xf32>
    %159 = tpu.matmul %158, %157, %cst_63 {dimension_numbers = #tpu.dot_dimension_numbers<[1], [0], [0], [1], [0, 0, 1, 1], [], []>} : vector<16x4xf32>, vector<4x256xf32>, vector<16x256xf32> -> vector<16x256xf32>
    %160 = vector.broadcast %5 : vector<16x1xf32> to vector<16x256xf32>
    %161 = arith.addf %159, %160 : vector<16x256xf32>
    %c0_64 = arith.constant 0 : index
    %c0_65 = arith.constant 0 : index
    %162 = vector.load %arg1[%c0_64, %c0_65] : memref<16x256xf32, #tpu.memory_space<vmem>>, vector<16x256xf32>
    %163 = arith.addf %161, %162 : vector<16x256xf32>
    %cst_66 = arith.constant 0.000000e+00 : f32
    %164 = vector.broadcast %cst_66 : f32 to vector<16x256xf32>
    %165 = arith.maximumf %163, %164 : vector<16x256xf32>
    %c0_67 = arith.constant 0 : index
    %c0_68 = arith.constant 0 : index
    %166 = vector.load %arg9[%c0_67, %c0_68] : memref<16x256xf32, #tpu.memory_space<vmem>>, vector<16x256xf32>
    tpu.vector_store %arg9[%c0_67, %c0_68], %165 {strides = array<i32>} : memref<16x256xf32, #tpu.memory_space<vmem>>, vector<16x256xf32>,
    return
  }
  func.func @transform_0(%arg0: i32) -> (i32, i32) {
    %c0_i32 = arith.constant 0 : i32
    %c0_i32_0 = arith.constant 0 : i32
    return %c0_i32, %arg0 : i32, i32
  }
  func.func @transform_1(%arg0: i32) -> (i32, i32) {
    %c0_i32 = arith.constant 0 : i32
    %c0_i32_0 = arith.constant 0 : i32
    %c0_i32_1 = arith.constant 0 : i32
    return %c0_i32, %c0_i32_0 : i32, i32
  }
  func.func @transform_2(%arg0: i32) -> (i32, i32, i32) {
    %c0_i32 = arith.constant 0 : i32
    %c0_i32_0 = arith.constant 0 : i32
    %c0_i32_1 = arith.constant 0 : i32
    %c0_i32_2 = arith.constant 0 : i32
    return %c0_i32, %c0_i32_0, %c0_i32_1 : i32, i32, i32
  }
  func.func @transform_3(%arg0: i32) -> (i32, i32) {
    %c0_i32 = arith.constant 0 : i32
    %c0_i32_0 = arith.constant 0 : i32
    %c0_i32_1 = arith.constant 0 : i32
    return %c0_i32, %c0_i32_0 : i32, i32
  }
  func.func @transform_4(%arg0: i32) -> (i32, i32) {
    %c0_i32 = arith.constant 0 : i32
    %c0_i32_0 = arith.constant 0 : i32
    %c0_i32_1 = arith.constant 0 : i32
    return %c0_i32, %c0_i32_0 : i32, i32
  }
  func.func @transform_5(%arg0: i32) -> (i32, i32) {
    %c0_i32 = arith.constant 0 : i32
    %c0_i32_0 = arith.constant 0 : i32
    %c0_i32_1 = arith.constant 0 : i32
    return %c0_i32, %c0_i32_0 : i32, i32
  }
  func.func @transform_6(%arg0: i32) -> (i32, i32, i32) {
    %c0_i32 = arith.constant 0 : i32
    %c0_i32_0 = arith.constant 0 : i32
    %c0_i32_1 = arith.constant 0 : i32
    %c0_i32_2 = arith.constant 0 : i32
    return %c0_i32, %c0_i32_0, %c0_i32_1 : i32, i32, i32
  }
  func.func @transform_7(%arg0: i32) -> (i32, i32) {
    %c0_i32 = arith.constant 0 : i32
    %c0_i32_0 = arith.constant 0 : i32
    %c0_i32_1 = arith.constant 0 : i32
    return %c0_i32, %c0_i32_0 : i32, i32
  }
  func.func @transform_8(%arg0: i32) -> (i32, i32) {
    %c0_i32 = arith.constant 0 : i32
    %c0_i32_0 = arith.constant 0 : i32
    return %c0_i32, %arg0 : i32, i32
  }
}

</mosaic_0001>

<llo_original>
// kernel: tpu_custom_call.1
$region0: #{tpu_custom_call.1}
  #allocation0 [shape = 'u32[]', space=smem, size = 0x4, offset = 0x4, fixed_abs, tag = 'smem constant byte address 0x4 - core index']
  #allocation1 [shape = 'u32[144,128]{1,0:T(1,128)}', space=vmem, size = 0x12000, scoped, tag = 'internal scratch']
  %s0 = inlined_call_operand.vmem [shape: f32[16,512], index: 0, kind: input, shape index: {}]
  %s1 = inlined_call_operand.vmem [shape: f32[4,16], index: 1, kind: input, shape index: {}]
  %s2 = inlined_call_operand.vmem [shape: f32[4,4,36], index: 2, kind: input, shape index: {}]
  %s3 = inlined_call_operand.vmem [shape: f32[16,4], index: 3, kind: input, shape index: {}]
  %s4 = inlined_call_operand.vmem [shape: f32[4,4], index: 4, kind: input, shape index: {}]
  %s5 = inlined_call_operand.vmem [shape: f32[16,4], index: 5, kind: input, shape index: {}]
  %s6 = inlined_call_operand.hbm [shape: f32[3,36,256], index: 6, kind: input, shape index: {}]
  %s7 = inlined_call_operand.vmem [shape: f32[80,1], index: 7, kind: input, shape index: {}]
  %s8 = inlined_call_operand.hbm [shape: f32[16,512], index: 8, kind: output, shape index: {}]
  %s9 = sld [smem:[#allocation0]]
  $region92: #{tpu_custom_call.1} parent=0
    _
  %s11 = ssub.s32 1, %s9
  %s12 = scalar_select 0, %s11, %s9
  $region1: #{tpu_custom_call.1} parent=0
    #allocation2 [shape = 'u8[32768]{0}', space=vmem, size = 0x8000, scoped, tag = 'input window, operand 0']
    #allocation3 [shape = 'u8[122880]{0}', space=vmem, size = 0x1e000, scoped, tag = 'input window, operand 6, single buffered']
    #allocation4 [shape = 's32[2]{0}', space=sflag, size = 0x8, scoped, tag = 'scoped memory for tpu_custom_call.1']
    #allocation5 [shape = 's32[2]{0}', space=sflag, size = 0x8, scoped, tag = 'scoped memory for tpu_custom_call.1']
    #allocation6 [shape = 'u8[32768]{0}', space=vmem, size = 0x8000, scoped, tag = 'output window, operand 0']
    %13 = vsyncpa [#allocation4], 0
    %14 = vsyncpa [#allocation5], 0
    %s15 = scalar_lea.sflag [#allocation5], 1
    %16 = vsyncpa %s15, 0
    loop: start=0, step=1, limit=4
    $region2: #{tpu_custom_call.1} parent=1 // loop_pre_header
      _
    $region3: #{tpu_custom_call.1} parent=1 // loop_header
      %s18 = sphi 0, %s22
      %p19 = scmp.ge.s32.totalorder %s18, 4
      %s28 = sphi 0, %s30
      %s31 = sphi 0, %s28
      %s32 = sphi 0, %s31
      %s48 = sphi 0, %s32
      %s52 = sphi 0, %s52
      %s54 = sphi 0, %s52
      %s55 = sphi 0, %s54
      %s69 = sphi 0, %s55
      %s73 = sphi 0, %s73
      %s75 = sphi 0, %s73
      %s76 = sphi 0, %s75
      %s90 = sphi 0, %s76
      %s94 = sphi 0, %s94
      %s96 = sphi 0, %s94
      %s97 = sphi 0, %s96
      %s111 = sphi 0, %s97
      %s115 = sphi 0, %s115
      %s117 = sphi 0, %s115
      %s118 = sphi 0, %s117
      %s132 = sphi 0, %s118
      %s136 = sphi 0, %s136
      %s138 = sphi 0, %s136
      %s139 = sphi 0, %s138
      %s153 = sphi 0, %s139
      %s157 = sphi 0, %s157
      %s159 = sphi 0, %s157
      %s160 = sphi 0, %s159
      %s174 = sphi 0, %s160
      %s178 = sphi 0, %s178
      %s180 = sphi 0, %s178
      %s181 = sphi 0, %s180
      %s195 = sphi 0, %s181
      %s201 = sphi 0, %s203
      %s204 = sphi 0, %s201
      %s205 = sphi 0, %s204
      %s221 = sphi 0, %s205
    $region4: #{tpu_custom_call.1} parent=1 // loop_header_branch
      %21 = sbr.rel (%p19) target = $region8
    $region5: #{tpu_custom_call.1} parent=1 // loop_body
      %s23 = ssub.s32 %s18, 1
      %s24 = ssub.s32 %s18, 2
      %s25 = sadd.s32 %s18, 1
      %s26 = ssub.s32 %s18, %s25
      %p27 = scmp.eq.s32.totalorder %s26, 0
      %s29 = sadd.s32 %s28, 1
      %s30 = scalar_select %p27, %s28, %s29
      %p33 = pneg %p27
      %p34 = scmp.eq.s32.totalorder %s18, 1
      %p35 = por %p33, %p34
      %p36 = scmp.ne.s32.totalorder %s28, %s31
      %p37 = scmp.eq.s32.totalorder %s18, 0
      %p38 = por %p36, %p37
      %p39 = scmp.ne.s32.totalorder %s28, %s31
      %p40 = scmp.eq.s32.totalorder %s23, 1
      %p41 = por %p39, %p40
      %p42 = scmp.ne.s32.totalorder %s31, %s32
      %p43 = scmp.eq.s32.totalorder %s23, 0
      %p44 = por %p42, %p43
      %p45 = scmp.ne.s32.totalorder %s31, %s32
      %p46 = scmp.eq.s32.totalorder %s24, 1
      %p47 = por %p45, %p46
      %p49 = scmp.ne.s32.totalorder %s32, %s48
      %p50 = scmp.eq.s32.totalorder %s24, 0
      %p51 = por %p49, %p50
      %s53 = sadd.s32 %s52, 1
      %p56 = scmp.eq.s32.totalorder %s18, 1
      %p57 = scmp.ne.s32.totalorder %s52, %s54
      %p58 = scmp.eq.s32.totalorder %s18, 0
      %p59 = por %p57, %p58
      %p60 = scmp.ne.s32.totalorder %s52, %s54
      %p61 = scmp.eq.s32.totalorder %s23, 1
      %p62 = por %p60, %p61
      %p63 = scmp.ne.s32.totalorder %s54, %s55
      %p64 = scmp.eq.s32.totalorder %s23, 0
      %p65 = por %p63, %p64
      %p66 = scmp.ne.s32.totalorder %s54, %s55
      %p67 = scmp.eq.s32.totalorder %s24, 1
      %p68 = por %p66, %p67
      %p70 = scmp.ne.s32.totalorder %s55, %s69
      %p71 = scmp.eq.s32.totalorder %s24, 0
      %p72 = por %p70, %p71
      %s74 = sadd.s32 %s73, 1
      %p77 = scmp.eq.s32.totalorder %s18, 1
      %p78 = scmp.ne.s32.totalorder %s73, %s75
      %p79 = scmp.eq.s32.totalorder %s18, 0
      %p80 = por %p78, %p79
      %p81 = scmp.ne.s32.totalorder %s73, %s75
      %p82 = scmp.eq.s32.totalorder %s23, 1
      %p83 = por %p81, %p82
      %p84 = scmp.ne.s32.totalorder %s75, %s76
      %p85 = scmp.eq.s32.totalorder %s23, 0
      %p86 = por %p84, %p85
      %p87 = scmp.ne.s32.totalorder %s75, %s76
      %p88 = scmp.eq.s32.totalorder %s24, 1
      %p89 = por %p87, %p88
      %p91 = scmp.ne.s32.totalorder %s76, %s90
      %p92 = scmp.eq.s32.totalorder %s24, 0
      %p93 = por %p91, %p92
      %s95 = sadd.s32 %s94, 1
      %p98 = scmp.eq.s32.totalorder %s18, 1
      %p99 = scmp.ne.s32.totalorder %s94, %s96
      %p100 = scmp.eq.s32.totalorder %s18, 0
      %p101 = por %p99, %p100
      %p102 = scmp.ne.s32.totalorder %s94, %s96
      %p103 = scmp.eq.s32.totalorder %s23, 1
      %p104 = por %p102, %p103
      %p105 = scmp.ne.s32.totalorder %s96, %s97
      %p106 = scmp.eq.s32.totalorder %s23, 0
      %p107 = por %p105, %p106
      %p108 = scmp.ne.s32.totalorder %s96, %s97
      %p109 = scmp.eq.s32.totalorder %s24, 1
      %p110 = por %p108, %p109
      %p112 = scmp.ne.s32.totalorder %s97, %s111
      %p113 = scmp.eq.s32.totalorder %s24, 0
      %p114 = por %p112, %p113
      %s116 = sadd.s32 %s115, 1
      %p119 = scmp.eq.s32.totalorder %s18, 1
      %p120 = scmp.ne.s32.totalorder %s115, %s117
      %p121 = scmp.eq.s32.totalorder %s18, 0
      %p122 = por %p120, %p121
      %p123 = scmp.ne.s32.totalorder %s115, %s117
      %p124 = scmp.eq.s32.totalorder %s23, 1
      %p125 = por %p123, %p124
      %p126 = scmp.ne.s32.totalorder %s117, %s118
      %p127 = scmp.eq.s32.totalorder %s23, 0
      %p128 = por %p126, %p127
      %p129 = scmp.ne.s32.totalorder %s117, %s118
      %p130 = scmp.eq.s32.totalorder %s24, 1
      %p131 = por %p129, %p130
      %p133 = scmp.ne.s32.totalorder %s118, %s132
      %p134 = scmp.eq.s32.totalorder %s24, 0
      %p135 = por %p133, %p134
      %s137 = sadd.s32 %s136, 1
      %p140 = scmp.eq.s32.totalorder %s18, 1
      %p141 = scmp.ne.s32.totalorder %s136, %s138
      %p142 = scmp.eq.s32.totalorder %s18, 0
      %p143 = por %p141, %p142
      %p144 = scmp.ne.s32.totalorder %s136, %s138
      %p145 = scmp.eq.s32.totalorder %s23, 1
      %p146 = por %p144, %p145
      %p147 = scmp.ne.s32.totalorder %s138, %s139
      %p148 = scmp.eq.s32.totalorder %s23, 0
      %p149 = por %p147, %p148
      %p150 = scmp.ne.s32.totalorder %s138, %s139
      %p151 = scmp.eq.s32.totalorder %s24, 1
      %p152 = por %p150, %p151
      %p154 = scmp.ne.s32.totalorder %s139, %s153
      %p155 = scmp.eq.s32.totalorder %s24, 0
      %p156 = por %p154, %p155
      %s158 = sadd.s32 %s157, 1
      %p161 = scmp.eq.s32.totalorder %s18, 1
      %p162 = scmp.ne.s32.totalorder %s157, %s159
      %p163 = scmp.eq.s32.totalorder %s18, 0
      %p164 = por %p162, %p163
      %p165 = scmp.ne.s32.totalorder %s157, %s159
      %p166 = scmp.eq.s32.totalorder %s23, 1
      %p167 = por %p165, %p166
      %p168 = scmp.ne.s32.totalorder %s159, %s160
      %p169 = scmp.eq.s32.totalorder %s23, 0
      %p170 = por %p168, %p169
      %p171 = scmp.ne.s32.totalorder %s159, %s160
      %p172 = scmp.eq.s32.totalorder %s24, 1
      %p173 = por %p171, %p172
      %p175 = scmp.ne.s32.totalorder %s160, %s174
      %p176 = scmp.eq.s32.totalorder %s24, 0
      %p177 = por %p175, %p176
      %s179 = sadd.s32 %s178, 1
      %p182 = scmp.eq.s32.totalorder %s18, 1
      %p183 = scmp.ne.s32.totalorder %s178, %s180
      %p184 = scmp.eq.s32.totalorder %s18, 0
      %p185 = por %p183, %p184
      %p186 = scmp.ne.s32.totalorder %s178, %s180
      %p187 = scmp.eq.s32.totalorder %s23, 1
      %p188 = por %p186, %p187
      %p189 = scmp.ne.s32.totalorder %s180, %s181
      %p190 = scmp.eq.s32.totalorder %s23, 0
      %p191 = por %p189, %p190
      %p192 = scmp.ne.s32.totalorder %s180, %s181
      %p193 = scmp.eq.s32.totalorder %s24, 1
      %p194 = por %p192, %p193
      %p196 = scmp.ne.s32.totalorder %s181, %s195
      %p197 = scmp.eq.s32.totalorder %s24, 0
      %p198 = por %p196, %p197
      %s199 = ssub.s32 %s18, %s25
      %p200 = scmp.eq.s32.totalorder %s199, 0
      %s202 = sadd.s32 %s201, 1
      %s203 = scalar_select %p200, %s201, %s202
      %p206 = pneg %p200
      %p207 = scmp.eq.s32.totalorder %s18, 1
      %p208 = por %p206, %p207
      %p209 = scmp.ne.s32.totalorder %s201, %s204
      %p210 = scmp.eq.s32.totalorder %s18, 0
      %p211 = por %p209, %p210
      %p212 = scmp.ne.s32.totalorder %s201, %s204
      %p213 = scmp.eq.s32.totalorder %s23, 1
      %p214 = por %p212, %p213
      %p215 = scmp.ne.s32.totalorder %s204, %s205
      %p216 = scmp.eq.s32.totalorder %s23, 0
      %p217 = por %p215, %p216
      %p218 = scmp.ne.s32.totalorder %s204, %s205
      %p219 = scmp.eq.s32.totalorder %s24, 1
      %p220 = por %p218, %p219
      %p222 = scmp.ne.s32.totalorder %s205, %s221
      %p223 = scmp.eq.s32.totalorder %s24, 0
      %p224 = por %p222, %p223
      %p225 = scmp.le.s32.totalorder 1, %s18
      %p226 = scmp.lt.s32.totalorder %s18, 3
      %p227 = pnand %p225, %p226
      %p228 = pneg %p227
      // Predicated region
      $region9: #{tpu_custom_call.1} parent=5 // pred_check
        _
      $region10: #{tpu_custom_call.1} parent=5 // pred_check_branch
        %230 = sbr.rel (%p227) target = $region12
      $region11: #{tpu_custom_call.1} parent=5 // pred_region
        %s231 = ssub.s32 %s18, 1
        // Predicated region
        $region13: #{tpu_custom_call.1} parent=11 // pred_check
          %p232 = pneg %p65
        $region14: #{tpu_custom_call.1} parent=11 // pred_check_branch
          %234 = sbr.rel (%p232) target = $region16
        $region15: #{tpu_custom_call.1} parent=11 // pred_region
          _
        $region16: #{tpu_custom_call.1} parent=11 // pred_fallthru
          _
        // Predicated region
        $region17: #{tpu_custom_call.1} parent=11 // pred_check
          %p235 = pneg %p86
        $region18: #{tpu_custom_call.1} parent=11 // pred_check_branch
          %237 = sbr.rel (%p235) target = $region20
        $region19: #{tpu_custom_call.1} parent=11 // pred_region
          _
        $region20: #{tpu_custom_call.1} parent=11 // pred_fallthru
          _
        // Predicated region
        $region21: #{tpu_custom_call.1} parent=11 // pred_check
          %p238 = pneg %p107
        $region22: #{tpu_custom_call.1} parent=11 // pred_check_branch
          %240 = sbr.rel (%p238) target = $region24
        $region23: #{tpu_custom_call.1} parent=11 // pred_region
          _
        $region24: #{tpu_custom_call.1} parent=11 // pred_fallthru
          _
        // Predicated region
        $region25: #{tpu_custom_call.1} parent=11 // pred_check
          %p241 = pneg %p128
        $region26: #{tpu_custom_call.1} parent=11 // pred_check_branch
          %243 = sbr.rel (%p241) target = $region28
        $region27: #{tpu_custom_call.1} parent=11 // pred_region
          _
        $region28: #{tpu_custom_call.1} parent=11 // pred_fallthru
          _
        // Predicated region
        $region29: #{tpu_custom_call.1} parent=11 // pred_check
          %p244 = pneg %p149
        $region30: #{tpu_custom_call.1} parent=11 // pred_check_branch
          %246 = sbr.rel (%p244) target = $region32
        $region31: #{tpu_custom_call.1} parent=11 // pred_region
          _
        $region32: #{tpu_custom_call.1} parent=11 // pred_fallthru
          _
        // Predicated region
        $region33: #{tpu_custom_call.1} parent=11 // pred_check
          %p247 = pneg %p170
        $region34: #{tpu_custom_call.1} parent=11 // pred_check_branch
          %249 = sbr.rel (%p247) target = $region36
        $region35: #{tpu_custom_call.1} parent=11 // pred_region
          %s251 = ssub.s32 3840, 3840
          %252 = vsyncadd [#allocation4], %s251
          %s253 = sshll.u32 [#allocation3], 4
          %s254 = int_to_ptr.vmem [resolvable:$true] %s253
          %259 = dma.hbm_to_vmem [thread:$0]  %s6, 3840, %s254, [#allocation4], 256, 256, 16
        $region36: #{tpu_custom_call.1} parent=11 // pred_fallthru
          _
        // Predicated region
        $region37: #{tpu_custom_call.1} parent=11 // pred_check
          %p260 = pneg %p191
        $region38: #{tpu_custom_call.1} parent=11 // pred_check_branch
          %262 = sbr.rel (%p260) target = $region40
        $region39: #{tpu_custom_call.1} parent=11 // pred_region
          _
        $region40: #{tpu_custom_call.1} parent=11 // pred_fallthru
          _
      $region12: #{tpu_custom_call.1} parent=5 // pred_fallthru
        _
      %p263 = scmp.lt.s32.totalorder %s18, 2
      // Predicated region
      $region41: #{tpu_custom_call.1} parent=5 // pred_check
        %p264 = pneg %p263
      $region42: #{tpu_custom_call.1} parent=5 // pred_check_branch
        %266 = sbr.rel (%p264) target = $region44
      $region43: #{tpu_custom_call.1} parent=5 // pred_region
        // Predicated region
        $region45: #{tpu_custom_call.1} parent=43 // pred_check
          %p267 = pneg %p38
        $region46: #{tpu_custom_call.1} parent=43 // pred_check_branch
          %269 = sbr.rel (%p267) target = $region48
        $region47: #{tpu_custom_call.1} parent=43 // pred_region
          %s270 = sand.u32 %s28, 1
          %s271 = sand.u32 %s28, 1
          %s272 = smul.addr %s271, 32
          %s273 = scalar_lea.vmem [#allocation2], %s272
          %s274 = smul.u32 2, %s18
          %s275 = smul.addr %s274, 8
          %s276 = scalar_lea.vmem %s0, %s275
          // Predicated region
          $region49: #{tpu_custom_call.1} parent=47 // pred_check
            _
          $region50: #{tpu_custom_call.1} parent=47 // pred_check_branch
            %278 = sbr.rel (0) target = $region52
          $region51: #{tpu_custom_call.1} parent=47 // pred_region
            // Predicated region
            $region53: #{tpu_custom_call.1} parent=51 // pred_check
              _
            $region54: #{tpu_custom_call.1} parent=51 // pred_check_branch
              %280 = sbr.rel (0) target = $region56
            $region55: #{tpu_custom_call.1} parent=51 // pred_region
              loop: start=0, step=1, limit=1
              $region57: #{tpu_custom_call.1} parent=55 // loop_pre_header
                _
              $region58: #{tpu_custom_call.1} parent=55 // loop_header
                %s282 = sphi 0, %s286
                %p283 = scmp.ge.s32.totalorder %s282, 1
                %s287 = sphi %s276, %s276
                %s288 = sphi %s273, %s273
              $region59: #{tpu_custom_call.1} parent=55 // loop_header_branch
                %285 = sbr.rel (%p283) target = $region63
              $region60: #{tpu_custom_call.1} parent=55 // loop_body
                %v289 = vld [vmem:[%s287] sm:$0xff]
                %290 = vst [vmem:[%s288] sm:$0xff] %v289
                %v291 = vld [vmem:[%s287 + $0x8] sm:$0xff]
                %292 = vst [vmem:[%s288 + $0x8] sm:$0xff] %v291
                %v293 = vld [vmem:[%s287 + $0x20] sm:$0xff]
                %294 = vst [vmem:[%s288 + $0x10] sm:$0xff] %v293
                %v295 = vld [vmem:[%s287 + $0x28] sm:$0xff]
                %296 = vst [vmem:[%s288 + $0x18] sm:$0xff] %v295
              $region61: #{tpu_custom_call.1} parent=55 // loop_footer
                %s286 = sadd.s32 1, %s282
              $region62: #{tpu_custom_call.1} parent=55 // loop_footer_branch
                %281 = sbr.rel target = $region58
              $region63: #{tpu_custom_call.1} parent=55 // loop_exit
                _
            $region56: #{tpu_custom_call.1} parent=51 // pred_fallthru
              _
            // Predicated region
            $region64: #{tpu_custom_call.1} parent=51 // pred_check
              _
            $region65: #{tpu_custom_call.1} parent=51 // pred_check_branch
              %298 = sbr.rel target = $region67
            $region66: #{tpu_custom_call.1} parent=51 // pred_region
              _
            $region67: #{tpu_custom_call.1} parent=51 // pred_fallthru
              _
          $region52: #{tpu_custom_call.1} parent=47 // pred_fallthru
            _
          %299 = vnop
        $region48: #{tpu_custom_call.1} parent=43 // pred_fallthru
          _
      $region44: #{tpu_custom_call.1} parent=5 // pred_fallthru
        _
      %p300 = scmp.le.s32.totalorder 1, %s18
      %p301 = scmp.lt.s32.totalorder %s18, 3
      %p302 = pnand %p300, %p301
      %p303 = pneg %p302
      // Predicated region
      $region68: #{tpu_custom_call.1} parent=5 // pred_check
        _
      $region69: #{tpu_custom_call.1} parent=5 // pred_check_branch
        %305 = sbr.rel (%p302) target = $region71
      $region70: #{tpu_custom_call.1} parent=5 // pred_region
        %s306 = ssub.s32 %s18, 1
        %s307 = sand.u32 %s31, 1
        %s308 = sand.u32 %s31, 1
        %s309 = smul.addr %s308, 32
        %s310 = scalar_lea.vmem [#allocation2], %s309
        // Predicated region
        $region72: #{tpu_custom_call.1} parent=70 // pred_check
          %p311 = pneg %p44
        $region73: #{tpu_custom_call.1} parent=70 // pred_check_branch
          %313 = sbr.rel (%p311) target = $region75
        $region74: #{tpu_custom_call.1} parent=70 // pred_region
          _
        $region75: #{tpu_custom_call.1} parent=70 // pred_fallthru
          _
        // Predicated region
        $region76: #{tpu_custom_call.1} parent=70 // pred_check
          %p314 = pneg %p170
        $region77: #{tpu_custom_call.1} parent=70 // pred_check_branch
          %316 = sbr.rel (%p314) target = $region79
        $region78: #{tpu_custom_call.1} parent=70 // pred_region
          %317 = dma.done [#allocation4], 3840
        $region79: #{tpu_custom_call.1} parent=70 // pred_fallthru
          _
        %s318 = sand.u32 %s31, 1
        %s319 = sand.u32 %s31, 1
        %s320 = smul.addr %s319, 32
        %s321 = scalar_lea.vmem [#allocation2], %s320
        %p322 = pneg %p44
        %p323 = pneg %p41
        %p324 = pneg %p65
        %p325 = pneg %p62
        %p326 = pneg %p86
        %p327 = pneg %p83
        %p328 = pneg %p107
        %p329 = pneg %p104
        %p330 = pneg %p128
        %p331 = pneg %p125
        %p332 = pneg %p149
        %p333 = pneg %p146
        %p334 = pneg %p170
        %p335 = pneg %p167
        %p336 = pneg %p191
        %p337 = pneg %p188
        %p338 = pneg %p217
        %p339 = pneg %p214
        %s340 = sand.u32 %s204, 1
        %s341 = scalar_lea.sflag [#allocation5], %s340
        %s342 = sand.u32 %s204, 1
        %s343 = smul.addr %s342, 32
        %s344 = scalar_lea.vmem [#allocation6], %s343
        %s345 = smul.u32 2, %s23
        %s346 = smul.u32 2, %s23
        %v347 = vld [vmem:[%s7] sm:$0xff]
        %v348 = vld [vmem:[%s7 + $0x8] sm:$0xff]
        %v349 = vld [vmem:[%s7 + $0x10] sm:$0xff]
        %v350 = vld [vmem:[%s7 + $0x18] sm:$0xff]
        %v351 = vld [vmem:[%s7 + $0x20] sm:$0xff]
        %v352 = vld [vmem:[%s7 + $0x28] sm:$0xff]
        %v353 = vld [vmem:[%s7 + $0x30] sm:$0xff]
        %v354 = vld [vmem:[%s7 + $0x38] sm:$0xff]
        %v355 = vld [vmem:[%s7 + $0x40] sm:$0xff]
        %v356 = vld [vmem:[%s7 + $0x48] sm:$0xff]
        %v357 = vld [vmem:[%s1] sm:$0xf]
        %v358 = vld [vmem:[%s310] sm:$0xff]
        %v359 = vld [vmem:[%s310 + $0x8] sm:$0xff]
        %v360 = vld [vmem:[%s310 + $0x10] sm:$0xff]
        %v361 = vld [vmem:[%s310 + $0x18] sm:$0xff]
        %363 = vset.pattern.permute.xlu0 0
        %364 = vperm.xlu0 %363, %v347
        %v365 = vpop.permute.xlu0 %364
        %vm367 = vcmask 130048
        %v369 = vsel %vm367, %v357, 0
        %371 = vmatprep.subr.mxu0 %v359
        %372 = vmatpush1.msra.mxu0 %v358
        %373 = vmatprep.subr.mxu0 %v361
        %374 = vmatpush1.msra.mxu0 %v360
        %375 = vmatprep.subr.mxu0 0.0
        %376 = vmatpush1.msra.mxu0 0.0
        %377 = vmatprep.subr.mxu0 0.0
        %378 = vmatpush1.msra.mxu0 0.0
        %379 = vmatprep.subr.mxu0 0.0
        %380 = vmatpush1.msra.mxu0 0.0
        %381 = vmatprep.subr.mxu0 0.0
        %382 = vmatpush1.msra.mxu0 0.0
        %383 = vmatprep.subr.mxu0 0.0
        %384 = vmatpush1.msra.mxu0 0.0
        %385 = vmatprep.subr.mxu0 0.0
        %386 = vmatpush1.msra.mxu0 0.0
        %387 = vmatprep.subr.mxu0 0.0
        %388 = vmatpush1.msra.mxu0 0.0
        %389 = vmatprep.subr.mxu0 0.0
        %390 = vmatpush1.msra.mxu0 0.0
        %391 = vmatprep.subr.mxu0 0.0
        %392 = vmatpush1.msra.mxu0 0.0
        %393 = vmatprep.subr.mxu0 0.0
        %394 = vmatpush1.msra.mxu0 0.0
        %395 = vmatprep.subr.mxu0 0.0
        %396 = vmatpush1.msra.mxu0 0.0
        %397 = vmatprep.subr.mxu0 0.0
        %398 = vmatpush1.msra.mxu0 0.0
        %399 = vmatprep.subr.mxu0 0.0
        %400 = vmatpush1.msra.mxu0 0.0
        %401 = vmatprep.subr.mxu0 0.0
        %402 = vmatpush1.msra.mxu0 0.0
        %403 = vmatprep.subr.mxu0 0.0
        %404 = vmatpush1.msra.mxu0 0.0
        %405 = vmatprep.subr.mxu0 0.0
        %406 = vmatpush1.msra.mxu0 0.0
        %407 = vmatprep.subr.mxu0 0.0
        %408 = vmatpush1.msra.mxu0 0.0
        %409 = vmatprep.subr.mxu0 0.0
        %410 = vmatpush1.msra.mxu0 0.0
        %411 = vmatprep.subr.mxu0 0.0
        %412 = vmatpush1.msra.mxu0 0.0
        %413 = vmatprep.subr.mxu0 0.0
        %414 = vmatpush1.msra.mxu0 0.0
        %415 = vmatprep.subr.mxu0 0.0
        %416 = vmatpush1.msra.mxu0 0.0
        %417 = vmatprep.subr.mxu0 0.0
        %418 = vmatpush1.msra.mxu0 0.0
        %419 = vmatprep.subr.mxu0 0.0
        %420 = vmatpush1.msra.mxu0 0.0
        %421 = vmatprep.subr.mxu0 0.0
        %422 = vmatpush1.msra.mxu0 0.0
        %423 = vmatprep.subr.mxu0 0.0
        %424 = vmatpush1.msra.mxu0 0.0
        %425 = vmatprep.subr.mxu0 0.0
        %426 = vmatpush1.msra.mxu0 0.0
        %427 = vmatprep.subr.mxu0 0.0
        %428 = vmatpush1.msra.mxu0 0.0
        %429 = vmatprep.subr.mxu0 0.0
        %430 = vmatpush1.msra.mxu0 0.0
        %431 = vmatprep.subr.mxu0 0.0
        %432 = vmatpush1.msra.mxu0 0.0
        %433 = vmatprep.subr.mxu0 0.0
        %434 = vmatpush1.msra.mxu0 0.0
        %435 = vmatprep.mubr.f32.mxu0 0.0
        %436 = vmatmul.mubr.f32.gmra.mrb[0].mxu0 %v369
        %v437 = vpop.f32.mrb[0].mxu0
        %v438 = vadd.f32 %v365, %v437
        %v439 = vpop.f32.mrb[0].mxu0
        %v440 = vadd.f32 %v365, %v439
        %441 = vdwg.mxu0
        %v442 = vmax.f32 %v438, 0.0
        %v443 = vmax.f32 %v440, 0.0
        %444 = vrot.lane.b32.xlu0 %v442, 17
        %v445 = vpop.permute.xlu0 %444
        %446 = vrot.lane.b32.xlu0 %v443, 17
        %v447 = vpop.permute.xlu0 %446
        %v448 = vlaneseq
        %v449 = vand.u32 %v448, 127
        %vm450 = vcmp.lt.s32.totalorder %v449, 17
        %v451 = vsel %vm450, %v445, %v447
        %v452 = vsel %vm450, %v447, %v445
        %453 = vrot.lane.b32.xlu0 %v442, 16
        %v454 = vpop.permute.xlu0 %453
        %455 = vrot.lane.b32.xlu0 %v443, 16
        %v456 = vpop.permute.xlu0 %455
        %vm457 = vcmp.lt.s32.totalorder %v449, 16
        %v458 = vsel %vm457, %v454, %v456
        %v459 = vsel %vm457, %v456, %v454
        %460 = vrot.lane.b32.xlu0 %v442, 15
        %v461 = vpop.permute.xlu0 %460
        %462 = vrot.lane.b32.xlu0 %v443, 15
        %v463 = vpop.permute.xlu0 %462
        %vm464 = vcmp.lt.s32.totalorder %v449, 15
        %v465 = vsel %vm464, %v461, %v463
        %v466 = vsel %vm464, %v463, %v461
        %467 = vrot.lane.b32.xlu0 %v442, 1
        %v468 = vpop.permute.xlu0 %467
        %469 = vrot.lane.b32.xlu0 %v443, 1
        %v470 = vpop.permute.xlu0 %469
        %vm471 = vcmp.lt.s32.totalorder %v449, 1
        %v472 = vsel %vm471, %v468, %v470
        %v473 = vsel %vm471, %v470, %v468
        %474 = vrot.lane.b32.xlu0 %v442, 127
        %v475 = vpop.permute.xlu0 %474
        %476 = vrot.lane.b32.xlu0 %v443, 127
        %v477 = vpop.permute.xlu0 %476
        %vm478 = vcmp.lt.s32.totalorder %v449, 127
        %v479 = vsel %vm478, %v475, %v477
        %v480 = vsel %vm478, %v477, %v475
        %481 = vrot.lane.b32.xlu0 %v442, 113
        %v482 = vpop.permute.xlu0 %481
        %483 = vrot.lane.b32.xlu0 %v443, 113
        %v484 = vpop.permute.xlu0 %483
        %vm485 = vcmp.lt.s32.totalorder %v449, 113
        %v486 = vsel %vm485, %v482, %v484
        %v487 = vsel %vm485, %v484, %v482
        %488 = vrot.lane.b32.xlu0 %v442, 112
        %v489 = vpop.permute.xlu0 %488
        %490 = vrot.lane.b32.xlu0 %v443, 112
        %v491 = vpop.permute.xlu0 %490
        %vm492 = vcmp.lt.s32.totalorder %v449, 112
        %v493 = vsel %vm492, %v489, %v491
        %v494 = vsel %vm492, %v491, %v489
        %495 = vrot.lane.b32.xlu0 %v442, 111
        %v496 = vpop.permute.xlu0 %495
        %497 = vrot.lane.b32.xlu0 %v443, 111
        %v498 = vpop.permute.xlu0 %497
        %vm499 = vcmp.lt.s32.totalorder %v449, 111
        %v500 = vsel %vm499, %v496, %v498
        %v501 = vsel %vm499, %v498, %v496
        %v504 = vrot.slane %v459, 4
        %v505 = vrot.slane %v458, 4
        %v510 = vrot.slane %v473, 4
        %v511 = vrot.slane %v472, 4
        %v516 = vrot.slane %v479, 4
        %v517 = vrot.slane %v480, 4
        %v522 = vrot.slane %v493, 4
        %v523 = vrot.slane %v494, 4
        %vm526 = vcmask 1043456
        %v527 = vsel %vm526, %v452, %v504
        %v528 = vsel %vm526, %v451, %v505
        %v529 = vsel %vm526, %v466, %v510
        %v530 = vsel %vm526, %v465, %v511
        %v531 = vsel %vm526, %v442, %v516
        %v532 = vsel %vm526, %v443, %v517
        %v533 = vsel %vm526, %v486, %v522
        %v534 = vsel %vm526, %v487, %v523
        %v535 = vld [vmem:[#allocation3] sm:$0xff]
        %v536 = vld [vmem:[#allocation3 + $0x8] sm:$0xff]
        %v537 = vld [vmem:[#allocation3 + $0x10] sm:$0xff]
        %v538 = vld [vmem:[#allocation3 + $0x18] sm:$0xff]
        %v539 = vld [vmem:[#allocation3 + $0x20] sm:$0xff]
        %v540 = vld [vmem:[#allocation3 + $0x28] sm:$0xff]
        %v541 = vld [vmem:[#allocation3 + $0x30] sm:$0xff]
        %v542 = vld [vmem:[#allocation3 + $0x38] sm:$0xff]
        %v543 = vld [vmem:[#allocation3 + $0x40] sm:$0xf]
        %v544 = vld [vmem:[#allocation3 + $0x48] sm:$0xf]
        %v545 = vmul.f32 %v527, %v535
        %v546 = vmul.f32 %v528, %v536
        %v547 = vmul.f32 %v529, %v537
        %v548 = vmul.f32 %v530, %v538
        %v549 = vmul.f32 %v531, %v539
        %v550 = vmul.f32 %v532, %v540
        %v551 = vmul.f32 %v533, %v541
        %v552 = vmul.f32 %v534, %v542
        %v553 = vmul.f32 %v500, %v543
        %v554 = vmul.f32 %v501, %v544
        %v555 = vld [vmem:[%s2] sm:$0xf]
        %557 = vset.pattern.permute.xlu0 0
        %558 = vperm.xlu0 %557, %v348
        %v559 = vpop.permute.xlu0 %558
        %vm561 = vcmask 293888
        %v563 = vsel %vm561, %v555, 0
        %v566 = vsel %vm526, %v553, 0
        %v569 = vsel %vm526, %v554, 0
        %571 = vmatprep.subr.mxu0 %v546
        %572 = vmatpush1.msra.mxu0 %v545
        %573 = vmatprep.subr.mxu0 %v548
        %574 = vmatpush1.msra.mxu0 %v547
        %575 = vmatprep.subr.mxu0 %v550
        %576 = vmatpush1.msra.mxu0 %v549
        %577 = vmatprep.subr.mxu0 %v552
        %578 = vmatpush1.msra.mxu0 %v551
        %579 = vmatprep.subr.mxu0 %v569
        %580 = vmatpush1.msra.mxu0 %v566
        %581 = vmatprep.subr.mxu0 0.0
        %582 = vmatpush1.msra.mxu0 0.0
        %583 = vmatprep.subr.mxu0 0.0
        %584 = vmatpush1.msra.mxu0 0.0
        %585 = vmatprep.subr.mxu0 0.0
        %586 = vmatpush1.msra.mxu0 0.0
        %587 = vmatprep.subr.mxu0 0.0
        %588 = vmatpush1.msra.mxu0 0.0
        %589 = vmatprep.subr.mxu0 0.0
        %590 = vmatpush1.msra.mxu0 0.0
        %591 = vmatprep.subr.mxu0 0.0
        %592 = vmatpush1.msra.mxu0 0.0
        %593 = vmatprep.subr.mxu0 0.0
        %594 = vmatpush1.msra.mxu0 0.0
        %595 = vmatprep.subr.mxu0 0.0
        %596 = vmatpush1.msra.mxu0 0.0
        %597 = vmatprep.subr.mxu0 0.0
        %598 = vmatpush1.msra.mxu0 0.0
        %599 = vmatprep.subr.mxu0 0.0
        %600 = vmatpush1.msra.mxu0 0.0
        %601 = vmatprep.subr.mxu0 0.0
        %602 = vmatpush1.msra.mxu0 0.0
        %603 = vmatprep.subr.mxu0 0.0
        %604 = vmatpush1.msra.mxu0 0.0
        %605 = vmatprep.subr.mxu0 0.0
        %606 = vmatpush1.msra.mxu0 0.0
        %607 = vmatprep.subr.mxu0 0.0
        %608 = vmatpush1.msra.mxu0 0.0
        %609 = vmatprep.subr.mxu0 0.0
        %610 = vmatpush1.msra.mxu0 0.0
        %611 = vmatprep.subr.mxu0 0.0
        %612 = vmatpush1.msra.mxu0 0.0
        %613 = vmatprep.subr.mxu0 0.0
        %614 = vmatpush1.msra.mxu0 0.0
        %615 = vmatprep.subr.mxu0 0.0
        %616 = vmatpush1.msra.mxu0 0.0
        %617 = vmatprep.subr.mxu0 0.0
        %618 = vmatpush1.msra.mxu0 0.0
        %619 = vmatprep.subr.mxu0 0.0
        %620 = vmatpush1.msra.mxu0 0.0
        %621 = vmatprep.subr.mxu0 0.0
        %622 = vmatpush1.msra.mxu0 0.0
        %623 = vmatprep.subr.mxu0 0.0
        %624 = vmatpush1.msra.mxu0 0.0
        %625 = vmatprep.subr.mxu0 0.0
        %626 = vmatpush1.msra.mxu0 0.0
        %627 = vmatprep.subr.mxu0 0.0
        %628 = vmatpush1.msra.mxu0 0.0
        %629 = vmatprep.subr.mxu0 0.0
        %630 = vmatpush1.msra.mxu0 0.0
        %631 = vmatprep.subr.mxu0 0.0
        %632 = vmatpush1.msra.mxu0 0.0
        %633 = vmatprep.subr.mxu0 0.0
        %634 = vmatpush1.msra.mxu0 0.0
        %635 = vmatprep.mubr.f32.mxu0 0.0
        %636 = vmatmul.mubr.f32.gmra.mrb[0].mxu0 %v563
        %v637 = vpop.f32.mrb[0].mxu0
        %v638 = vadd.f32 %v559, %v637
        %v639 = vpop.f32.mrb[0].mxu0
        %v640 = vadd.f32 %v559, %v639
        %641 = vdwg.mxu0
        %v642 = vmax.f32 %v638, 0.0
        %v643 = vmax.f32 %v640, 0.0
        %v644 = vadd.f32 %v642, %v442
        %v645 = vadd.f32 %v643, %v443
        %646 = vrot.lane.b32.xlu0 %v644, 17
        %v647 = vpop.permute.xlu0 %646
        %648 = vrot.lane.b32.xlu0 %v645, 17
        %v649 = vpop.permute.xlu0 %648
        %v650 = vsel %vm450, %v647, %v649
        %v651 = vsel %vm450, %v649, %v647
        %652 = vrot.lane.b32.xlu0 %v644, 16
        %v653 = vpop.permute.xlu0 %652
        %654 = vrot.lane.b32.xlu0 %v645, 16
        %v655 = vpop.permute.xlu0 %654
        %v656 = vsel %vm457, %v653, %v655
        %v657 = vsel %vm457, %v655, %v653
        %658 = vrot.lane.b32.xlu0 %v644, 15
        %v659 = vpop.permute.xlu0 %658
        %660 = vrot.lane.b32.xlu0 %v645, 15
        %v661 = vpop.permute.xlu0 %660
        %v662 = vsel %vm464, %v659, %v661
        %v663 = vsel %vm464, %v661, %v659
        %664 = vrot.lane.b32.xlu0 %v644, 1
        %v665 = vpop.permute.xlu0 %664
        %666 = vrot.lane.b32.xlu0 %v645, 1
        %v667 = vpop.permute.xlu0 %666
        %v668 = vsel %vm471, %v665, %v667
        %v669 = vsel %vm471, %v667, %v665
        %670 = vrot.lane.b32.xlu0 %v644, 127
        %v671 = vpop.permute.xlu0 %670
        %672 = vrot.lane.b32.xlu0 %v645, 127
        %v673 = vpop.permute.xlu0 %672
        %v674 = vsel %vm478, %v671, %v673
        %v675 = vsel %vm478, %v673, %v671
        %676 = vrot.lane.b32.xlu0 %v644, 113
        %v677 = vpop.permute.xlu0 %676
        %678 = vrot.lane.b32.xlu0 %v645, 113
        %v679 = vpop.permute.xlu0 %678
        %v680 = vsel %vm485, %v677, %v679
        %v681 = vsel %vm485, %v679, %v677
        %682 = vrot.lane.b32.xlu0 %v644, 112
        %v683 = vpop.permute.xlu0 %682
        %684 = vrot.lane.b32.xlu0 %v645, 112
        %v685 = vpop.permute.xlu0 %684
        %v686 = vsel %vm492, %v683, %v685
        %v687 = vsel %vm492, %v685, %v683
        %688 = vrot.lane.b32.xlu0 %v644, 111
        %v689 = vpop.permute.xlu0 %688
        %690 = vrot.lane.b32.xlu0 %v645, 111
        %v691 = vpop.permute.xlu0 %690
        %v692 = vsel %vm499, %v689, %v691
        %v693 = vsel %vm499, %v691, %v689
        %v696 = vrot.slane %v657, 4
        %v697 = vrot.slane %v656, 4
        %v702 = vrot.slane %v669, 4
        %v703 = vrot.slane %v668, 4
        %v708 = vrot.slane %v674, 4
        %v709 = vrot.slane %v675, 4
        %v714 = vrot.slane %v686, 4
        %v715 = vrot.slane %v687, 4
        %v718 = vsel %vm526, %v651, %v696
        %v719 = vsel %vm526, %v650, %v697
        %v720 = vsel %vm526, %v663, %v702
        %v721 = vsel %vm526, %v662, %v703
        %v722 = vsel %vm526, %v644, %v708
        %v723 = vsel %vm526, %v645, %v709
        %v724 = vsel %vm526, %v680, %v714
        %v725 = vsel %vm526, %v681, %v715
        %v726 = vmul.f32 %v718, %v535
        %v727 = vmul.f32 %v719, %v536
        %v728 = vmul.f32 %v720, %v537
        %v729 = vmul.f32 %v721, %v538
        %v730 = vmul.f32 %v722, %v539
        %v731 = vmul.f32 %v723, %v540
        %v732 = vmul.f32 %v724, %v541
        %v733 = vmul.f32 %v725, %v542
        %v734 = vmul.f32 %v692, %v543
        %v735 = vmul.f32 %v693, %v544
        %s736 = scalar_lea.vmem %s2, 4
        %v737 = vld [vmem:[%s736] sm:$0xf]
        %739 = vset.pattern.permute.xlu0 0
        %740 = vperm.xlu0 %739, %v349
        %v741 = vpop.permute.xlu0 %740
        %v744 = vsel %vm561, %v737, 0
        %v747 = vsel %vm526, %v734, 0
        %v750 = vsel %vm526, %v735, 0
        %752 = vmatprep.subr.mxu0 %v727
        %753 = vmatpush1.msra.mxu0 %v726
        %754 = vmatprep.subr.mxu0 %v729
        %755 = vmatpush1.msra.mxu0 %v728
        %756 = vmatprep.subr.mxu0 %v731
        %757 = vmatpush1.msra.mxu0 %v730
        %758 = vmatprep.subr.mxu0 %v733
        %759 = vmatpush1.msra.mxu0 %v732
        %760 = vmatprep.subr.mxu0 %v750
        %761 = vmatpush1.msra.mxu0 %v747
        %762 = vmatprep.subr.mxu0 0.0
        %763 = vmatpush1.msra.mxu0 0.0
        %764 = vmatprep.subr.mxu0 0.0
        %765 = vmatpush1.msra.mxu0 0.0
        %766 = vmatprep.subr.mxu0 0.0
        %767 = vmatpush1.msra.mxu0 0.0
        %768 = vmatprep.subr.mxu0 0.0
        %769 = vmatpush1.msra.mxu0 0.0
        %770 = vmatprep.subr.mxu0 0.0
        %771 = vmatpush1.msra.mxu0 0.0
        %772 = vmatprep.subr.mxu0 0.0
        %773 = vmatpush1.msra.mxu0 0.0
        %774 = vmatprep.subr.mxu0 0.0
        %775 = vmatpush1.msra.mxu0 0.0
        %776 = vmatprep.subr.mxu0 0.0
        %777 = vmatpush1.msra.mxu0 0.0
        %778 = vmatprep.subr.mxu0 0.0
        %779 = vmatpush1.msra.mxu0 0.0
        %780 = vmatprep.subr.mxu0 0.0
        %781 = vmatpush1.msra.mxu0 0.0
        %782 = vmatprep.subr.mxu0 0.0
        %783 = vmatpush1.msra.mxu0 0.0
        %784 = vmatprep.subr.mxu0 0.0
        %785 = vmatpush1.msra.mxu0 0.0
        %786 = vmatprep.subr.mxu0 0.0
        %787 = vmatpush1.msra.mxu0 0.0
        %788 = vmatprep.subr.mxu0 0.0
        %789 = vmatpush1.msra.mxu0 0.0
        %790 = vmatprep.subr.mxu0 0.0
        %791 = vmatpush1.msra.mxu0 0.0
        %792 = vmatprep.subr.mxu0 0.0
        %793 = vmatpush1.msra.mxu0 0.0
        %794 = vmatprep.subr.mxu0 0.0
        %795 = vmatpush1.msra.mxu0 0.0
        %796 = vmatprep.subr.mxu0 0.0
        %797 = vmatpush1.msra.mxu0 0.0
        %798 = vmatprep.subr.mxu0 0.0
        %799 = vmatpush1.msra.mxu0 0.0
        %800 = vmatprep.subr.mxu0 0.0
        %801 = vmatpush1.msra.mxu0 0.0
        %802 = vmatprep.subr.mxu0 0.0
        %803 = vmatpush1.msra.mxu0 0.0
        %804 = vmatprep.subr.mxu0 0.0
        %805 = vmatpush1.msra.mxu0 0.0
        %806 = vmatprep.subr.mxu0 0.0
        %807 = vmatpush1.msra.mxu0 0.0
        %808 = vmatprep.subr.mxu0 0.0
        %809 = vmatpush1.msra.mxu0 0.0
        %810 = vmatprep.subr.mxu0 0.0
        %811 = vmatpush1.msra.mxu0 0.0
        %812 = vmatprep.subr.mxu0 0.0
        %813 = vmatpush1.msra.mxu0 0.0
        %814 = vmatprep.subr.mxu0 0.0
        %815 = vmatpush1.msra.mxu0 0.0
        %816 = vmatprep.mubr.f32.mxu0 0.0
        %817 = vmatmul.mubr.f32.gmra.mrb[0].mxu0 %v744
        %v818 = vpop.f32.mrb[0].mxu0
        %v819 = vadd.f32 %v741, %v818
        %v820 = vpop.f32.mrb[0].mxu0
        %v821 = vadd.f32 %v741, %v820
        %822 = vdwg.mxu0
        %v823 = vmax.f32 %v819, 0.0
        %v824 = vmax.f32 %v821, 0.0
        %v825 = vadd.f32 %v823, %v442
        %v826 = vadd.f32 %v824, %v443
        %827 = vrot.lane.b32.xlu0 %v825, 34
        %v828 = vpop.permute.xlu0 %827
        %829 = vrot.lane.b32.xlu0 %v826, 34
        %v830 = vpop.permute.xlu0 %829
        %vm831 = vcmp.lt.s32.totalorder %v449, 34
        %v832 = vsel %vm831, %v828, %v830
        %v833 = vsel %vm831, %v830, %v828
        %834 = vrot.lane.b32.xlu0 %v825, 32
        %v835 = vpop.permute.xlu0 %834
        %836 = vrot.lane.b32.xlu0 %v826, 32
        %v837 = vpop.permute.xlu0 %836
        %vm838 = vcmp.lt.s32.totalorder %v449, 32
        %v839 = vsel %vm838, %v835, %v837
        %v840 = vsel %vm838, %v837, %v835
        %841 = vrot.lane.b32.xlu0 %v825, 30
        %v842 = vpop.permute.xlu0 %841
        %843 = vrot.lane.b32.xlu0 %v826, 30
        %v844 = vpop.permute.xlu0 %843
        %vm845 = vcmp.lt.s32.totalorder %v449, 30
        %v846 = vsel %vm845, %v842, %v844
        %v847 = vsel %vm845, %v844, %v842
        %848 = vrot.lane.b32.xlu0 %v825, 2
        %v849 = vpop.permute.xlu0 %848
        %850 = vrot.lane.b32.xlu0 %v826, 2
        %v851 = vpop.permute.xlu0 %850
        %vm852 = vcmp.lt.s32.totalorder %v449, 2
        %v853 = vsel %vm852, %v849, %v851
        %v854 = vsel %vm852, %v851, %v849
        %855 = vrot.lane.b32.xlu0 %v825, 126
        %v856 = vpop.permute.xlu0 %855
        %857 = vrot.lane.b32.xlu0 %v826, 126
        %v858 = vpop.permute.xlu0 %857
        %vm859 = vcmp.lt.s32.totalorder %v449, 126
        %v860 = vsel %vm859, %v856, %v858
        %v861 = vsel %vm859, %v858, %v856
        %862 = vrot.lane.b32.xlu0 %v825, 98
        %v863 = vpop.permute.xlu0 %862
        %864 = vrot.lane.b32.xlu0 %v826, 98
        %v865 = vpop.permute.xlu0 %864
        %vm866 = vcmp.lt.s32.totalorder %v449, 98
        %v867 = vsel %vm866, %v863, %v865
        %v868 = vsel %vm866, %v865, %v863
        %869 = vrot.lane.b32.xlu0 %v825, 96
        %v870 = vpop.permute.xlu0 %869
        %871 = vrot.lane.b32.xlu0 %v826, 96
        %v872 = vpop.permute.xlu0 %871
        %vm873 = vcmp.lt.s32.totalorder %v449, 96
        %v874 = vsel %vm873, %v870, %v872
        %v875 = vsel %vm873, %v872, %v870
        %876 = vrot.lane.b32.xlu0 %v825, 94
        %v877 = vpop.permute.xlu0 %876
        %878 = vrot.lane.b32.xlu0 %v826, 94
        %v879 = vpop.permute.xlu0 %878
        %vm880 = vcmp.lt.s32.totalorder %v449, 94
        %v881 = vsel %vm880, %v877, %v879
        %v882 = vsel %vm880, %v879, %v877
        %v885 = vrot.slane %v840, 4
        %v886 = vrot.slane %v839, 4
        %v891 = vrot.slane %v854, 4
        %v892 = vrot.slane %v853, 4
        %v897 = vrot.slane %v860, 4
        %v898 = vrot.slane %v861, 4
        %v903 = vrot.slane %v874, 4
        %v904 = vrot.slane %v875, 4
        %v907 = vsel %vm526, %v833, %v885
        %v908 = vsel %vm526, %v832, %v886
        %v909 = vsel %vm526, %v847, %v891
        %v910 = vsel %vm526, %v846, %v892
        %v911 = vsel %vm526, %v825, %v897
        %v912 = vsel %vm526, %v826, %v898
        %v913 = vsel %vm526, %v867, %v903
        %v914 = vsel %vm526, %v868, %v904
        %s915 = scalar_lea.vmem [#allocation3], 80
        %v916 = vld [vmem:[%s915] sm:$0xff]
        %v917 = vld [vmem:[%s915 + $0x8] sm:$0xff]
        %v918 = vld [vmem:[%s915 + $0x10] sm:$0xff]
        %v919 = vld [vmem:[%s915 + $0x18] sm:$0xff]
        %v920 = vld [vmem:[%s915 + $0x20] sm:$0xff]
        %v921 = vld [vmem:[%s915 + $0x28] sm:$0xff]
        %v922 = vld [vmem:[%s915 + $0x30] sm:$0xff]
        %v923 = vld [vmem:[%s915 + $0x38] sm:$0xff]
        %v924 = vld [vmem:[%s915 + $0x40] sm:$0xf]
        %v925 = vld [vmem:[%s915 + $0x48] sm:$0xf]
        %v926 = vmul.f32 %v907, %v916
        %v927 = vmul.f32 %v908, %v917
        %v928 = vmul.f32 %v909, %v918
        %v929 = vmul.f32 %v910, %v919
        %v930 = vmul.f32 %v911, %v920
        %v931 = vmul.f32 %v912, %v921
        %v932 = vmul.f32 %v913, %v922
        %v933 = vmul.f32 %v914, %v923
        %v934 = vmul.f32 %v881, %v924
        %v935 = vmul.f32 %v882, %v925
        %s936 = scalar_lea.vmem %s2, 8
        %v937 = vld [vmem:[%s936] sm:$0xf]
        %939 = vset.pattern.permute.xlu0 0
        %940 = vperm.xlu0 %939, %v350
        %v941 = vpop.permute.xlu0 %940
        %v944 = vsel %vm561, %v937, 0
        %v947 = vsel %vm526, %v934, 0
        %v950 = vsel %vm526, %v935, 0
        %952 = vmatprep.subr.mxu0 %v927
        %953 = vmatpush1.msra.mxu0 %v926
        %954 = vmatprep.subr.mxu0 %v929
        %955 = vmatpush1.msra.mxu0 %v928
        %956 = vmatprep.subr.mxu0 %v931
        %957 = vmatpush1.msra.mxu0 %v930
        %958 = vmatprep.subr.mxu0 %v933
        %959 = vmatpush1.msra.mxu0 %v932
        %960 = vmatprep.subr.mxu0 %v950
        %961 = vmatpush1.msra.mxu0 %v947
        %962 = vmatprep.subr.mxu0 0.0
        %963 = vmatpush1.msra.mxu0 0.0
        %964 = vmatprep.subr.mxu0 0.0
        %965 = vmatpush1.msra.mxu0 0.0
        %966 = vmatprep.subr.mxu0 0.0
        %967 = vmatpush1.msra.mxu0 0.0
        %968 = vmatprep.subr.mxu0 0.0
        %969 = vmatpush1.msra.mxu0 0.0
        %970 = vmatprep.subr.mxu0 0.0
        %971 = vmatpush1.msra.mxu0 0.0
        %972 = vmatprep.subr.mxu0 0.0
        %973 = vmatpush1.msra.mxu0 0.0
        %974 = vmatprep.subr.mxu0 0.0
        %975 = vmatpush1.msra.mxu0 0.0
        %976 = vmatprep.subr.mxu0 0.0
        %977 = vmatpush1.msra.mxu0 0.0
        %978 = vmatprep.subr.mxu0 0.0
        %979 = vmatpush1.msra.mxu0 0.0
        %980 = vmatprep.subr.mxu0 0.0
        %981 = vmatpush1.msra.mxu0 0.0
        %982 = vmatprep.subr.mxu0 0.0
        %983 = vmatpush1.msra.mxu0 0.0
        %984 = vmatprep.subr.mxu0 0.0
        %985 = vmatpush1.msra.mxu0 0.0
        %986 = vmatprep.subr.mxu0 0.0
        %987 = vmatpush1.msra.mxu0 0.0
        %988 = vmatprep.subr.mxu0 0.0
        %989 = vmatpush1.msra.mxu0 0.0
        %990 = vmatprep.subr.mxu0 0.0
        %991 = vmatpush1.msra.mxu0 0.0
        %992 = vmatprep.subr.mxu0 0.0
        %993 = vmatpush1.msra.mxu0 0.0
        %994 = vmatprep.subr.mxu0 0.0
        %995 = vmatpush1.msra.mxu0 0.0
        %996 = vmatprep.subr.mxu0 0.0
        %997 = vmatpush1.msra.mxu0 0.0
        %998 = vmatprep.subr.mxu0 0.0
        %999 = vmatpush1.msra.mxu0 0.0
        %1000 = vmatprep.subr.mxu0 0.0
        %1001 = vmatpush1.msra.mxu0 0.0
        %1002 = vmatprep.subr.mxu0 0.0
        %1003 = vmatpush1.msra.mxu0 0.0
        %1004 = vmatprep.subr.mxu0 0.0
        %1005 = vmatpush1.msra.mxu0 0.0
        %1006 = vmatprep.subr.mxu0 0.0
        %1007 = vmatpush1.msra.mxu0 0.0
        %1008 = vmatprep.subr.mxu0 0.0
        %1009 = vmatpush1.msra.mxu0 0.0
        %1010 = vmatprep.subr.mxu0 0.0
        %1011 = vmatpush1.msra.mxu0 0.0
        %1012 = vmatprep.subr.mxu0 0.0
        %1013 = vmatpush1.msra.mxu0 0.0
        %1014 = vmatprep.subr.mxu0 0.0
        %1015 = vmatpush1.msra.mxu0 0.0
        %1016 = vmatprep.mubr.f32.mxu0 0.0
        %1017 = vmatmul.mubr.f32.gmra.mrb[0].mxu0 %v944
        %v1018 = vpop.f32.mrb[0].mxu0
        %v1019 = vadd.f32 %v941, %v1018
        %v1020 = vpop.f32.mrb[0].mxu0
        %v1021 = vadd.f32 %v941, %v1020
        %1022 = vdwg.mxu0
        %v1023 = vmax.f32 %v1019, 0.0
        %v1024 = vmax.f32 %v1021, 0.0
        %v1025 = vadd.f32 %v1023, %v442
        %v1026 = vadd.f32 %v1024, %v443
        %1027 = vrot.lane.b32.xlu0 %v1025, 51
        %v1028 = vpop.permute.xlu0 %1027
        %1029 = vrot.lane.b32.xlu0 %v1026, 51
        %v1030 = vpop.permute.xlu0 %1029
        %vm1031 = vcmp.lt.s32.totalorder %v449, 51
        %v1032 = vsel %vm1031, %v1028, %v1030
        %v1033 = vsel %vm1031, %v1030, %v1028
        %1034 = vrot.lane.b32.xlu0 %v1025, 48
        %v1035 = vpop.permute.xlu0 %1034
        %1036 = vrot.lane.b32.xlu0 %v1026, 48
        %v1037 = vpop.permute.xlu0 %1036
        %vm1038 = vcmp.lt.s32.totalorder %v449, 48
        %v1039 = vsel %vm1038, %v1035, %v1037
        %v1040 = vsel %vm1038, %v1037, %v1035
        %1041 = vrot.lane.b32.xlu0 %v1025, 45
        %v1042 = vpop.permute.xlu0 %1041
        %1043 = vrot.lane.b32.xlu0 %v1026, 45
        %v1044 = vpop.permute.xlu0 %1043
        %vm1045 = vcmp.lt.s32.totalorder %v449, 45
        %v1046 = vsel %vm1045, %v1042, %v1044
        %v1047 = vsel %vm1045, %v1044, %v1042
        %1048 = vrot.lane.b32.xlu0 %v1025, 3
        %v1049 = vpop.permute.xlu0 %1048
        %1050 = vrot.lane.b32.xlu0 %v1026, 3
        %v1051 = vpop.permute.xlu0 %1050
        %vm1052 = vcmp.lt.s32.totalorder %v449, 3
        %v1053 = vsel %vm1052, %v1049, %v1051
        %v1054 = vsel %vm1052, %v1051, %v1049
        %1055 = vrot.lane.b32.xlu0 %v1025, 125
        %v1056 = vpop.permute.xlu0 %1055
        %1057 = vrot.lane.b32.xlu0 %v1026, 125
        %v1058 = vpop.permute.xlu0 %1057
        %vm1059 = vcmp.lt.s32.totalorder %v449, 125
        %v1060 = vsel %vm1059, %v1056, %v1058
        %v1061 = vsel %vm1059, %v1058, %v1056
        %1062 = vrot.lane.b32.xlu0 %v1025, 83
        %v1063 = vpop.permute.xlu0 %1062
        %1064 = vrot.lane.b32.xlu0 %v1026, 83
        %v1065 = vpop.permute.xlu0 %1064
        %vm1066 = vcmp.lt.s32.totalorder %v449, 83
        %v1067 = vsel %vm1066, %v1063, %v1065
        %v1068 = vsel %vm1066, %v1065, %v1063
        %1069 = vrot.lane.b32.xlu0 %v1025, 80
        %v1070 = vpop.permute.xlu0 %1069
        %1071 = vrot.lane.b32.xlu0 %v1026, 80
        %v1072 = vpop.permute.xlu0 %1071
        %vm1073 = vcmp.lt.s32.totalorder %v449, 80
        %v1074 = vsel %vm1073, %v1070, %v1072
        %v1075 = vsel %vm1073, %v1072, %v1070
        %1076 = vrot.lane.b32.xlu0 %v1025, 77
        %v1077 = vpop.permute.xlu0 %1076
        %1078 = vrot.lane.b32.xlu0 %v1026, 77
        %v1079 = vpop.permute.xlu0 %1078
        %vm1080 = vcmp.lt.s32.totalorder %v449, 77
        %v1081 = vsel %vm1080, %v1077, %v1079
        %v1082 = vsel %vm1080, %v1079, %v1077
        %v1085 = vrot.slane %v1040, 4
        %v1086 = vrot.slane %v1039, 4
        %v1091 = vrot.slane %v1054, 4
        %v1092 = vrot.slane %v1053, 4
        %v1097 = vrot.slane %v1060, 4
        %v1098 = vrot.slane %v1061, 4
        %v1103 = vrot.slane %v1074, 4
        %v1104 = vrot.slane %v1075, 4
        %v1107 = vsel %vm526, %v1033, %v1085
        %v1108 = vsel %vm526, %v1032, %v1086
        %v1109 = vsel %vm526, %v1047, %v1091
        %v1110 = vsel %vm526, %v1046, %v1092
        %v1111 = vsel %vm526, %v1025, %v1097
        %v1112 = vsel %vm526, %v1026, %v1098
        %v1113 = vsel %vm526, %v1067, %v1103
        %v1114 = vsel %vm526, %v1068, %v1104
        %s1115 = scalar_lea.vmem [#allocation3], 160
        %v1116 = vld [vmem:[%s1115] sm:$0xff]
        %v1117 = vld [vmem:[%s1115 + $0x8] sm:$0xff]
        %v1118 = vld [vmem:[%s1115 + $0x10] sm:$0xff]
        %v1119 = vld [vmem:[%s1115 + $0x18] sm:$0xff]
        %v1120 = vld [vmem:[%s1115 + $0x20] sm:$0xff]
        %v1121 = vld [vmem:[%s1115 + $0x28] sm:$0xff]
        %v1122 = vld [vmem:[%s1115 + $0x30] sm:$0xff]
        %v1123 = vld [vmem:[%s1115 + $0x38] sm:$0xff]
        %v1124 = vld [vmem:[%s1115 + $0x40] sm:$0xf]
        %v1125 = vld [vmem:[%s1115 + $0x48] sm:$0xf]
        %v1126 = vmul.f32 %v1107, %v1116
        %v1127 = vmul.f32 %v1108, %v1117
        %v1128 = vmul.f32 %v1109, %v1118
        %v1129 = vmul.f32 %v1110, %v1119
        %v1130 = vmul.f32 %v1111, %v1120
        %v1131 = vmul.f32 %v1112, %v1121
        %v1132 = vmul.f32 %v1113, %v1122
        %v1133 = vmul.f32 %v1114, %v1123
        %v1134 = vmul.f32 %v1081, %v1124
        %v1135 = vmul.f32 %v1082, %v1125
        %s1136 = scalar_lea.vmem %s2, 12
        %v1137 = vld [vmem:[%s1136] sm:$0xf]
        %1139 = vset.pattern.permute.xlu0 0
        %1140 = vperm.xlu0 %1139, %v351
        %v1141 = vpop.permute.xlu0 %1140
        %v1144 = vsel %vm561, %v1137, 0
        %v1147 = vsel %vm526, %v1134, 0
        %v1150 = vsel %vm526, %v1135, 0
        %1152 = vmatprep.subr.mxu0 %v1127
        %1153 = vmatpush1.msra.mxu0 %v1126
        %1154 = vmatprep.subr.mxu0 %v1129
        %1155 = vmatpush1.msra.mxu0 %v1128
        %1156 = vmatprep.subr.mxu0 %v1131
        %1157 = vmatpush1.msra.mxu0 %v1130
        %1158 = vmatprep.subr.mxu0 %v1133
        %1159 = vmatpush1.msra.mxu0 %v1132
        %1160 = vmatprep.subr.mxu0 %v1150
        %1161 = vmatpush1.msra.mxu0 %v1147
        %1162 = vmatprep.subr.mxu0 0.0
        %1163 = vmatpush1.msra.mxu0 0.0
        %1164 = vmatprep.subr.mxu0 0.0
        %1165 = vmatpush1.msra.mxu0 0.0
        %1166 = vmatprep.subr.mxu0 0.0
        %1167 = vmatpush1.msra.mxu0 0.0
        %1168 = vmatprep.subr.mxu0 0.0
        %1169 = vmatpush1.msra.mxu0 0.0
        %1170 = vmatprep.subr.mxu0 0.0
        %1171 = vmatpush1.msra.mxu0 0.0
        %1172 = vmatprep.subr.mxu0 0.0
        %1173 = vmatpush1.msra.mxu0 0.0
        %1174 = vmatprep.subr.mxu0 0.0
        %1175 = vmatpush1.msra.mxu0 0.0
        %1176 = vmatprep.subr.mxu0 0.0
        %1177 = vmatpush1.msra.mxu0 0.0
        %1178 = vmatprep.subr.mxu0 0.0
        %1179 = vmatpush1.msra.mxu0 0.0
        %1180 = vmatprep.subr.mxu0 0.0
        %1181 = vmatpush1.msra.mxu0 0.0
        %1182 = vmatprep.subr.mxu0 0.0
        %1183 = vmatpush1.msra.mxu0 0.0
        %1184 = vmatprep.subr.mxu0 0.0
        %1185 = vmatpush1.msra.mxu0 0.0
        %1186 = vmatprep.subr.mxu0 0.0
        %1187 = vmatpush1.msra.mxu0 0.0
        %1188 = vmatprep.subr.mxu0 0.0
        %1189 = vmatpush1.msra.mxu0 0.0
        %1190 = vmatprep.subr.mxu0 0.0
        %1191 = vmatpush1.msra.mxu0 0.0
        %1192 = vmatprep.subr.mxu0 0.0
        %1193 = vmatpush1.msra.mxu0 0.0
        %1194 = vmatprep.subr.mxu0 0.0
        %1195 = vmatpush1.msra.mxu0 0.0
        %1196 = vmatprep.subr.mxu0 0.0
        %1197 = vmatpush1.msra.mxu0 0.0
        %1198 = vmatprep.subr.mxu0 0.0
        %1199 = vmatpush1.msra.mxu0 0.0
        %1200 = vmatprep.subr.mxu0 0.0
        %1201 = vmatpush1.msra.mxu0 0.0
        %1202 = vmatprep.subr.mxu0 0.0
        %1203 = vmatpush1.msra.mxu0 0.0
        %1204 = vmatprep.subr.mxu0 0.0
        %1205 = vmatpush1.msra.mxu0 0.0
        %1206 = vmatprep.subr.mxu0 0.0
        %1207 = vmatpush1.msra.mxu0 0.0
        %1208 = vmatprep.subr.mxu0 0.0
        %1209 = vmatpush1.msra.mxu0 0.0
        %1210 = vmatprep.subr.mxu0 0.0
        %1211 = vmatpush1.msra.mxu0 0.0
        %1212 = vmatprep.subr.mxu0 0.0
        %1213 = vmatpush1.msra.mxu0 0.0
        %1214 = vmatprep.subr.mxu0 0.0
        %1215 = vmatpush1.msra.mxu0 0.0
        %1216 = vmatprep.mubr.f32.mxu0 0.0
        %1217 = vmatmul.mubr.f32.gmra.mrb[0].mxu0 %v1144
        %v1218 = vpop.f32.mrb[0].mxu0
        %v1219 = vadd.f32 %v1141, %v1218
        %v1220 = vpop.f32.mrb[0].mxu0
        %v1221 = vadd.f32 %v1141, %v1220
        %1222 = vdwg.mxu0
        %v1223 = vmax.f32 %v1219, 0.0
        %v1224 = vmax.f32 %v1221, 0.0
        %v1225 = vsel %vm526, %v642, 0.0
        %v1226 = vsel %vm526, %v643, 0.0
        %v1227 = vadd.f32 %v1225, %v1226
        %1228 = vadd.xlane.f32.xlu0 %v1227
        %v1229 = vpop.xlane.xlu0 %1228
        %v1230 = vmul.f32 %v1229, 0.00390625
        %v1231 = vsel %vm526, %v823, 0.0
        %v1232 = vsel %vm526, %v824, 0.0
        %v1233 = vadd.f32 %v1231, %v1232
        %1234 = vadd.xlane.f32.xlu0 %v1233
        %v1235 = vpop.xlane.xlu0 %1234
        %v1236 = vmul.f32 %v1235, 0.00390625
        %v1237 = vsel %vm526, %v1023, 0.0
        %v1238 = vsel %vm526, %v1024, 0.0
        %v1239 = vadd.f32 %v1237, %v1238
        %1240 = vadd.xlane.f32.xlu0 %v1239
        %v1241 = vpop.xlane.xlu0 %1240
        %v1242 = vmul.f32 %v1241, 0.00390625
        %v1243 = vsel %vm526, %v1223, 0.0
        %v1244 = vsel %vm526, %v1224, 0.0
        %v1245 = vadd.f32 %v1243, %v1244
        %1246 = vadd.xlane.f32.xlu0 %v1245
        %v1247 = vpop.xlane.xlu0 %1246
        %v1248 = vmul.f32 %v1247, 0.00390625
        %vm1249 = vcmask 7168
        %v1250 = vsel %vm1249, %v1230, %v1236
        %vm1251 = vcmask 15360
        %v1252 = vsel %vm1251, %v1250, %v1242
        %vm1253 = vcmask 23552
        %v1254 = vsel %vm1253, %v1252, %v1248
        %v1255 = vld [vmem:[%s3] sm:$0xff]
        %v1256 = vld [vmem:[%s3 + $0x8] sm:$0xff]
        %vm1257 = vcmask 31744
        %v1259 = vsel %vm1257, %v1255, 0
        %v1262 = vsel %vm1257, %v1256, 0
        %v1265 = vsel %vm526, %v1254, 0
        %1267 = vmatprep.subr.mxu0 0.0
        %1268 = vmatpush1.msra.mxu0 %v1265
        %1269 = vmatprep.subr.mxu0 0.0
        %1270 = vmatpush1.msra.mxu0 0.0
        %1271 = vmatprep.subr.mxu0 0.0
        %1272 = vmatpush1.msra.mxu0 0.0
        %1273 = vmatprep.subr.mxu0 0.0
        %1274 = vmatpush1.msra.mxu0 0.0
        %1275 = vmatprep.subr.mxu0 0.0
        %1276 = vmatpush1.msra.mxu0 0.0
        %1277 = vmatprep.subr.mxu0 0.0
        %1278 = vmatpush1.msra.mxu0 0.0
        %1279 = vmatprep.subr.mxu0 0.0
        %1280 = vmatpush1.msra.mxu0 0.0
        %1281 = vmatprep.subr.mxu0 0.0
        %1282 = vmatpush1.msra.mxu0 0.0
        %1283 = vmatprep.subr.mxu0 0.0
        %1284 = vmatpush1.msra.mxu0 0.0
        %1285 = vmatprep.subr.mxu0 0.0
        %1286 = vmatpush1.msra.mxu0 0.0
        %1287 = vmatprep.subr.mxu0 0.0
        %1288 = vmatpush1.msra.mxu0 0.0
        %1289 = vmatprep.subr.mxu0 0.0
        %1290 = vmatpush1.msra.mxu0 0.0
        %1291 = vmatprep.subr.mxu0 0.0
        %1292 = vmatpush1.msra.mxu0 0.0
        %1293 = vmatprep.subr.mxu0 0.0
        %1294 = vmatpush1.msra.mxu0 0.0
        %1295 = vmatprep.subr.mxu0 0.0
        %1296 = vmatpush1.msra.mxu0 0.0
        %1297 = vmatprep.subr.mxu0 0.0
        %1298 = vmatpush1.msra.mxu0 0.0
        %1299 = vmatprep.subr.mxu0 0.0
        %1300 = vmatpush1.msra.mxu0 0.0
        %1301 = vmatprep.subr.mxu0 0.0
        %1302 = vmatpush1.msra.mxu0 0.0
        %1303 = vmatprep.subr.mxu0 0.0
        %1304 = vmatpush1.msra.mxu0 0.0
        %1305 = vmatprep.subr.mxu0 0.0
        %1306 = vmatpush1.msra.mxu0 0.0
        %1307 = vmatprep.subr.mxu0 0.0
        %1308 = vmatpush1.msra.mxu0 0.0
        %1309 = vmatprep.subr.mxu0 0.0
        %1310 = vmatpush1.msra.mxu0 0.0
        %1311 = vmatprep.subr.mxu0 0.0
        %1312 = vmatpush1.msra.mxu0 0.0
        %1313 = vmatprep.subr.mxu0 0.0
        %1314 = vmatpush1.msra.mxu0 0.0
        %1315 = vmatprep.subr.mxu0 0.0
        %1316 = vmatpush1.msra.mxu0 0.0
        %1317 = vmatprep.subr.mxu0 0.0
        %1318 = vmatpush1.msra.mxu0 0.0
        %1319 = vmatprep.subr.mxu0 0.0
        %1320 = vmatpush1.msra.mxu0 0.0
        %1321 = vmatprep.subr.mxu0 0.0
        %1322 = vmatpush1.msra.mxu0 0.0
        %1323 = vmatprep.subr.mxu0 0.0
        %1324 = vmatpush1.msra.mxu0 0.0
        %1325 = vmatprep.subr.mxu0 0.0
        %1326 = vmatpush1.msra.mxu0 0.0
        %1327 = vmatprep.subr.mxu0 0.0
        %1328 = vmatpush1.msra.mxu0 0.0
        %1329 = vmatprep.subr.mxu0 0.0
        %1330 = vmatpush1.msra.mxu0 0.0
        %1331 = vmatprep.mubr.f32.mxu0 0.0
        %1332 = vmatmul.mubr.f32.gmra.mrb[0].mxu0 %v1259
        %v1333 = vpop.f32.mrb[0].mxu0
        %v1334 = vadd.f32 0.0, %v1333
        %v1335 = vpop.f32.mrb[0].mxu0
        %1336 = vmatprep.mubr.f32.mxu0 0.0
        %1337 = vmatmul.mubr.f32.gmra.mrb[0].mxu0 %v1262
        %v1338 = vpop.f32.mrb[0].mxu0
        %v1339 = vadd.f32 0.0, %v1338
        %v1340 = vpop.f32.mrb[0].mxu0
        %1341 = vdwg.mxu0
        %v1343 = vrot.slane %v1334, 4
        %v1346 = vrot.slane %v1339, 4
        %v1348 = vsel %vm1249, %v1334, %v1343
        %v1349 = vsel %vm1251, %v1348, %v1339
        %v1350 = vsel %vm1253, %v1349, %v1346
        %v1351 = vxor.u32 %v1350, 2147483648
        %v1352 = vmul.f32 %v1351, 1.442695
        %v1353 = vpow.pop %v1352
        %v1354 = vadd.f32 %v1353, 1.0
        %v1355 = vrcp.pop %v1354
        %v1356 = vmul.f32 1.0, %v1355
        %v1357 = vmul.f32 %v1356, 1.442695
        %v1358 = vpow.pop %v1357
        %vm1359 = vcmask 27648
        %v1360 = vsel %vm1359, %v1358, 0.0
        %1361 = vadd.xlane.f32.xlu0 %v1360
        %v1362 = vpop.xlane.xlu0 %1361
        %v1363 = vrcp.pop %v1362
        %v1364 = vmul.f32 %v1358, %v1363
        %1366 = vset.pattern.permute.xlu0 0
        %1367 = vperm.xlu0 %1366, %v1364
        %v1368 = vpop.permute.xlu0 %1367
        %v1370 = vmul.f32 %v1368, %v642
        %v1371 = vmul.f32 %v1368, %v643
        %1372 = vset.pattern.permute.xlu0 1
        %1373 = vperm.xlu0 %1372, %v1364
        %v1374 = vpop.permute.xlu0 %1373
        %v1376 = vmul.f32 %v1374, %v823
        %v1377 = vmul.f32 %v1374, %v824
        %v1378 = vadd.f32 %v1370, %v1376
        %v1379 = vadd.f32 %v1371, %v1377
        %1380 = vset.pattern.permute.xlu0 2
        %1381 = vperm.xlu0 %1380, %v1364
        %v1382 = vpop.permute.xlu0 %1381
        %v1384 = vmul.f32 %v1382, %v1023
        %v1385 = vmul.f32 %v1382, %v1024
        %v1386 = vadd.f32 %v1378, %v1384
        %v1387 = vadd.f32 %v1379, %v1385
        %1388 = vset.pattern.permute.xlu0 3
        %1389 = vperm.xlu0 %1388, %v1364
        %v1390 = vpop.permute.xlu0 %1389
        %v1392 = vmul.f32 %v1390, %v1223
        %v1393 = vmul.f32 %v1390, %v1224
        %v1394 = vadd.f32 %v1386, %v1392
        %v1395 = vadd.f32 %v1387, %v1393
        %v1396 = vld [vmem:[%s4] sm:$0xf]
        %v1397 = vadd.f32 %v1394, %v442
        %v1398 = vadd.f32 %v1395, %v443
        %1400 = vset.pattern.permute.xlu0 0
        %1401 = vperm.xlu0 %1400, %v352
        %v1402 = vpop.permute.xlu0 %1401
        %v1405 = vsel %vm1257, %v1396, 0
        %v1408 = vsel %vm526, %v1397, 0
        %v1411 = vsel %vm526, %v1398, 0
        %1413 = vmatprep.subr.mxu0 %v1411
        %1414 = vmatpush1.msra.mxu0 %v1408
        %1415 = vmatprep.subr.mxu0 0.0
        %1416 = vmatpush1.msra.mxu0 0.0
        %1417 = vmatprep.subr.mxu0 0.0
        %1418 = vmatpush1.msra.mxu0 0.0
        %1419 = vmatprep.subr.mxu0 0.0
        %1420 = vmatpush1.msra.mxu0 0.0
        %1421 = vmatprep.subr.mxu0 0.0
        %1422 = vmatpush1.msra.mxu0 0.0
        %1423 = vmatprep.subr.mxu0 0.0
        %1424 = vmatpush1.msra.mxu0 0.0
        %1425 = vmatprep.subr.mxu0 0.0
        %1426 = vmatpush1.msra.mxu0 0.0
        %1427 = vmatprep.subr.mxu0 0.0
        %1428 = vmatpush1.msra.mxu0 0.0
        %1429 = vmatprep.subr.mxu0 0.0
        %1430 = vmatpush1.msra.mxu0 0.0
        %1431 = vmatprep.subr.mxu0 0.0
        %1432 = vmatpush1.msra.mxu0 0.0
        %1433 = vmatprep.subr.mxu0 0.0
        %1434 = vmatpush1.msra.mxu0 0.0
        %1435 = vmatprep.subr.mxu0 0.0
        %1436 = vmatpush1.msra.mxu0 0.0
        %1437 = vmatprep.subr.mxu0 0.0
        %1438 = vmatpush1.msra.mxu0 0.0
        %1439 = vmatprep.subr.mxu0 0.0
        %1440 = vmatpush1.msra.mxu0 0.0
        %1441 = vmatprep.subr.mxu0 0.0
        %1442 = vmatpush1.msra.mxu0 0.0
        %1443 = vmatprep.subr.mxu0 0.0
        %1444 = vmatpush1.msra.mxu0 0.0
        %1445 = vmatprep.subr.mxu0 0.0
        %1446 = vmatpush1.msra.mxu0 0.0
        %1447 = vmatprep.subr.mxu0 0.0
        %1448 = vmatpush1.msra.mxu0 0.0
        %1449 = vmatprep.subr.mxu0 0.0
        %1450 = vmatpush1.msra.mxu0 0.0
        %1451 = vmatprep.subr.mxu0 0.0
        %1452 = vmatpush1.msra.mxu0 0.0
        %1453 = vmatprep.subr.mxu0 0.0
        %1454 = vmatpush1.msra.mxu0 0.0
        %1455 = vmatprep.subr.mxu0 0.0
        %1456 = vmatpush1.msra.mxu0 0.0
        %1457 = vmatprep.subr.mxu0 0.0
        %1458 = vmatpush1.msra.mxu0 0.0
        %1459 = vmatprep.subr.mxu0 0.0
        %1460 = vmatpush1.msra.mxu0 0.0
        %1461 = vmatprep.subr.mxu0 0.0
        %1462 = vmatpush1.msra.mxu0 0.0
        %1463 = vmatprep.subr.mxu0 0.0
        %1464 = vmatpush1.msra.mxu0 0.0
        %1465 = vmatprep.subr.mxu0 0.0
        %1466 = vmatpush1.msra.mxu0 0.0
        %1467 = vmatprep.subr.mxu0 0.0
        %1468 = vmatpush1.msra.mxu0 0.0
        %1469 = vmatprep.subr.mxu0 0.0
        %1470 = vmatpush1.msra.mxu0 0.0
        %1471 = vmatprep.subr.mxu0 0.0
        %1472 = vmatpush1.msra.mxu0 0.0
        %1473 = vmatprep.subr.mxu0 0.0
        %1474 = vmatpush1.msra.mxu0 0.0
        %1475 = vmatprep.subr.mxu0 0.0
        %1476 = vmatpush1.msra.mxu0 0.0
        %1477 = vmatprep.mubr.f32.mxu0 0.0
        %1478 = vmatmul.mubr.f32.gmra.mrb[0].mxu0 %v1405
        %v1479 = vpop.f32.mrb[0].mxu0
        %v1480 = vadd.f32 %v1402, %v1479
        %v1481 = vpop.f32.mrb[0].mxu0
        %v1482 = vadd.f32 %v1402, %v1481
        %1483 = vdwg.mxu0
        %v1484 = vmax.f32 %v1480, 0.0
        %v1485 = vmax.f32 %v1482, 0.0
        %1487 = vset.pattern.permute.xlu0 0
        %1488 = vperm.xlu0 %1487, %v353
        %v1489 = vpop.permute.xlu0 %1488
        %v1491 = vmul.f32 %v1484, %v1489
        %v1492 = vmul.f32 %v1485, %v1489
        %1494 = vset.pattern.permute.xlu0 0
        %1495 = vperm.xlu0 %1494, %v354
        %v1496 = vpop.permute.xlu0 %1495
        %v1498 = vadd.f32 %v1491, %v1496
        %v1499 = vadd.f32 %v1492, %v1496
        %v1500 = vmax.f32 %v1498, 0.0
        %v1501 = vmax.f32 %v1499, 0.0
        %v1502 = vld [vmem:[%s5] sm:$0xff]
        %v1503 = vld [vmem:[%s5 + $0x8] sm:$0xff]
        %1505 = vset.pattern.permute.xlu0 0
        %1506 = vperm.xlu0 %1505, %v355
        %v1507 = vpop.permute.xlu0 %1506
        %1510 = vset.pattern.permute.xlu0 0
        %1511 = vperm.xlu0 %1510, %v356
        %v1512 = vpop.permute.xlu0 %1511
        %v1515 = vsel %vm1257, %v1502, 0
        %v1518 = vsel %vm1257, %v1503, 0
        %v1521 = vsel %vm526, %v1500, 0
        %v1524 = vsel %vm526, %v1501, 0
        %1526 = vmatprep.subr.mxu0 %v1524
        %1527 = vmatpush1.msra.mxu0 %v1521
        %1528 = vmatprep.subr.mxu0 0.0
        %1529 = vmatpush1.msra.mxu0 0.0
        %1530 = vmatprep.subr.mxu0 0.0
        %1531 = vmatpush1.msra.mxu0 0.0
        %1532 = vmatprep.subr.mxu0 0.0
        %1533 = vmatpush1.msra.mxu0 0.0
        %1534 = vmatprep.subr.mxu0 0.0
        %1535 = vmatpush1.msra.mxu0 0.0
        %1536 = vmatprep.subr.mxu0 0.0
        %1537 = vmatpush1.msra.mxu0 0.0
        %1538 = vmatprep.subr.mxu0 0.0
        %1539 = vmatpush1.msra.mxu0 0.0
        %1540 = vmatprep.subr.mxu0 0.0
        %1541 = vmatpush1.msra.mxu0 0.0
        %1542 = vmatprep.subr.mxu0 0.0
        %1543 = vmatpush1.msra.mxu0 0.0
        %1544 = vmatprep.subr.mxu0 0.0
        %1545 = vmatpush1.msra.mxu0 0.0
        %1546 = vmatprep.subr.mxu0 0.0
        %1547 = vmatpush1.msra.mxu0 0.0
        %1548 = vmatprep.subr.mxu0 0.0
        %1549 = vmatpush1.msra.mxu0 0.0
        %1550 = vmatprep.subr.mxu0 0.0
        %1551 = vmatpush1.msra.mxu0 0.0
        %1552 = vmatprep.subr.mxu0 0.0
        %1553 = vmatpush1.msra.mxu0 0.0
        %1554 = vmatprep.subr.mxu0 0.0
        %1555 = vmatpush1.msra.mxu0 0.0
        %1556 = vmatprep.subr.mxu0 0.0
        %1557 = vmatpush1.msra.mxu0 0.0
        %1558 = vmatprep.subr.mxu0 0.0
        %1559 = vmatpush1.msra.mxu0 0.0
        %1560 = vmatprep.subr.mxu0 0.0
        %1561 = vmatpush1.msra.mxu0 0.0
        %1562 = vmatprep.subr.mxu0 0.0
        %1563 = vmatpush1.msra.mxu0 0.0
        %1564 = vmatprep.subr.mxu0 0.0
        %1565 = vmatpush1.msra.mxu0 0.0
        %1566 = vmatprep.subr.mxu0 0.0
        %1567 = vmatpush1.msra.mxu0 0.0
        %1568 = vmatprep.subr.mxu0 0.0
        %1569 = vmatpush1.msra.mxu0 0.0
        %1570 = vmatprep.subr.mxu0 0.0
        %1571 = vmatpush1.msra.mxu0 0.0
        %1572 = vmatprep.subr.mxu0 0.0
        %1573 = vmatpush1.msra.mxu0 0.0
        %1574 = vmatprep.subr.mxu0 0.0
        %1575 = vmatpush1.msra.mxu0 0.0
        %1576 = vmatprep.subr.mxu0 0.0
        %1577 = vmatpush1.msra.mxu0 0.0
        %1578 = vmatprep.subr.mxu0 0.0
        %1579 = vmatpush1.msra.mxu0 0.0
        %1580 = vmatprep.subr.mxu0 0.0
        %1581 = vmatpush1.msra.mxu0 0.0
        %1582 = vmatprep.subr.mxu0 0.0
        %1583 = vmatpush1.msra.mxu0 0.0
        %1584 = vmatprep.subr.mxu0 0.0
        %1585 = vmatpush1.msra.mxu0 0.0
        %1586 = vmatprep.subr.mxu0 0.0
        %1587 = vmatpush1.msra.mxu0 0.0
        %1588 = vmatprep.subr.mxu0 0.0
        %1589 = vmatpush1.msra.mxu0 0.0
        %1590 = vmatprep.mubr.f32.mxu0 0.0
        %1591 = vmatmul.mubr.f32.gmra.mrb[0].mxu0 %v1515
        %v1592 = vpop.f32.mrb[0].mxu0
        %v1593 = vadd.f32 %v1507, %v1592
        %v1594 = vpop.f32.mrb[0].mxu0
        %v1595 = vadd.f32 %v1507, %v1594
        %1596 = vmatprep.mubr.f32.mxu0 0.0
        %1597 = vmatmul.mubr.f32.gmra.mrb[0].mxu0 %v1518
        %v1598 = vpop.f32.mrb[0].mxu0
        %v1599 = vadd.f32 %v1512, %v1598
        %v1600 = vpop.f32.mrb[0].mxu0
        %v1601 = vadd.f32 %v1512, %v1600
        %1602 = vdwg.mxu0
        %v1603 = vadd.f32 %v1593, %v358
        %v1604 = vadd.f32 %v1595, %v359
        %v1605 = vadd.f32 %v1599, %v360
        %v1606 = vadd.f32 %v1601, %v361
        %v1607 = vmax.f32 %v1603, 0.0
        %v1608 = vmax.f32 %v1604, 0.0
        %v1609 = vmax.f32 %v1605, 0.0
        %v1610 = vmax.f32 %v1606, 0.0
        %1611 = vst [vmem:[%s344] sm:$0xff] %v1607
        %1612 = vst [vmem:[%s344 + $0x8] sm:$0xff] %v1608
        %1613 = vst [vmem:[%s344 + $0x10] sm:$0xff] %v1609
        %1614 = vst [vmem:[%s344 + $0x18] sm:$0xff] %v1610
        %s1615 = sand.u32 %s204, 1
        %s1616 = scalar_lea.sflag [#allocation5], %s1615
        %s1617 = sand.u32 %s204, 1
        %s1618 = smul.addr %s1617, 32
        %s1619 = scalar_lea.vmem [#allocation6], %s1618
        // Predicated region
        $region80: #{tpu_custom_call.1} parent=70 // pred_check
          %p1620 = pneg %p214
        $region81: #{tpu_custom_call.1} parent=70 // pred_check_branch
          %1622 = sbr.rel (%p1620) target = $region83
        $region82: #{tpu_custom_call.1} parent=70 // pred_region
          %s1623 = smul.u32 2, %s23
          %s1625 = ssub.s32 512, 512
          %1626 = vsyncadd %s1616, %s1625
          %s1627 = smul.addr %s1623, 128
          %s1628 = scalar_lea.hbm %s8, %s1627
          %s1629 = sshll.u32 %s1619, 4
          %s1630 = int_to_ptr.vmem [resolvable:$true] %s1629
          %1635 = dma.vmem_to_hbm [thread:$0]  %s1630, 512, %s1628, %s1616, 256, 512, 16
        $region83: #{tpu_custom_call.1} parent=70 // pred_fallthru
          _
      $region71: #{tpu_custom_call.1} parent=5 // pred_fallthru
        _
      %p1636 = scmp.le.s32.totalorder 2, %s18
      // Predicated region
      $region84: #{tpu_custom_call.1} parent=5 // pred_check
        %p1637 = pneg %p1636
      $region85: #{tpu_custom_call.1} parent=5 // pred_check_branch
        %1639 = sbr.rel (%p1637) target = $region87
      $region86: #{tpu_custom_call.1} parent=5 // pred_region
        %s1640 = ssub.s32 %s18, 2
        // Predicated region
        $region88: #{tpu_custom_call.1} parent=86 // pred_check
          %p1641 = pneg %p220
        $region89: #{tpu_custom_call.1} parent=86 // pred_check_branch
          %1643 = sbr.rel (%p1641) target = $region91
        $region90: #{tpu_custom_call.1} parent=86 // pred_region
          %s1644 = sand.u32 %s205, 1
          %s1645 = scalar_lea.sflag [#allocation5], %s1644
          %s1646 = sand.u32 %s205, 1
          %s1647 = smul.addr %s1646, 32
          %s1648 = scalar_lea.vmem [#allocation6], %s1647
          %1649 = dma.done %s1645, 512
        $region91: #{tpu_custom_call.1} parent=86 // pred_fallthru
          _
      $region87: #{tpu_custom_call.1} parent=5 // pred_fallthru
        _
    $region6: #{tpu_custom_call.1} parent=1 // loop_footer
      %s22 = sadd.s32 1, %s18
    $region7: #{tpu_custom_call.1} parent=1 // loop_footer_branch
      %17 = sbr.rel target = $region3
    $region8: #{tpu_custom_call.1} parent=1 // loop_exit
      _
    %1650 = vsyncpa [#allocation4], 1
    %s1651 = scalar_lea.sflag [#allocation4], 1
    %1652 = vsyncpa %s1651, 1
    %1653 = vsyncpa [#allocation5], 1
    %s1654 = scalar_lea.sflag [#allocation5], 1
    %1655 = vsyncpa %s1654, 1

</llo_original>
